<compile_context>
chip_gen: v5e
topology: v5e:2x2
jax: 0.10.0
libtpu: 0.0.40
codegen_flags: <defaults>
</compile_context>

<pallas_src>
import jax
import jax.numpy as jnp
import numpy as np
from jax.experimental import pallas as pl
from jax.experimental.pallas import tpu as pltpu

# (kernel, stride) of the three Nature-CNN convs (padding=0 for all).
_CONV_CFG = ((8, 4), (4, 2), (3, 1))


def _conv_out(size, k, stride):
    return (size - k) // stride + 1


# ----------------------------- Pallas kernel ---------------------------------
def _nature_cnn_kernel(p1_ref, w1_ref, b1_ref,
                       s2_ref, w2_ref, b2_ref,
                       s3_ref, w3_ref, b3_ref,
                       wfc_ref, bfc_ref, o_ref):
    """Fused conv1+conv2+conv3+FC (bias + ReLU each) for ONE image.

    p1_ref : (1, P1, K1)    bf16  im2col patches of conv1 (P1 = Ho1*Wo1)
    w1_ref : (K1, C1)       bf16  conv1 im2col weight
    s*_ref : (T, Pout, Pin) bf16  0/1 row-selection matrices (in-kernel im2col)
    w*_ref : (T, Cin, Cout) bf16  per-tap conv weights
    wfc_ref: (P3, C3, F)    bf16  FC weight with torch NCHW-flatten folded in
    b*_ref : (1, C)         f32   biases
    o_ref  : (1, 1, F)      f32   output features
    """
    # ---- conv1: plain im2col GEMM -------------------------------------------
    h = jnp.dot(p1_ref[0], w1_ref[...], preferred_element_type=jnp.float32)
    h = jnp.maximum(h + b1_ref[...], 0.0).astype(jnp.bfloat16)       # (P1, C1)

    # ---- conv2 / conv3: gather patch rows with 0/1 selection GEMMs, then
    #      per-tap weight GEMMs, accumulating in f32.  Everything stays on the
    #      MXU; no strided slices / minor-dim reshapes inside the kernel. -----
    def conv_taps(h_in, s_ref, w_ref, b_ref):
        n_taps, p_out, _ = s_ref.shape
        c_out = w_ref.shape[-1]
        acc = jnp.zeros((p_out, c_out), jnp.float32)
        for t in range(n_taps):                     # static -> fully unrolled
            rows = jnp.dot(s_ref[t], h_in,
                           preferred_element_type=jnp.float32)       # exact gather
            acc = acc + jnp.dot(rows.astype(jnp.bfloat16), w_ref[t],
                                preferred_element_type=jnp.float32)
        return jnp.maximum(acc + b_ref[...], 0.0).astype(jnp.bfloat16)

    h = conv_taps(h, s2_ref, w2_ref, b2_ref)        # (P2, C2)
    h = conv_taps(h, s3_ref, w3_ref, b3_ref)        # (P3, C3)

    # ---- FC (+ ReLU).  torch's NCHW flatten order is folded into wfc. -------
    p3, _, feat = wfc_ref.shape
    acc = jnp.zeros((1, feat), jnp.float32)
    for p in range(p3):                             # P3 == 1 at these shapes
        acc = acc + jnp.dot(h[p:p + 1, :], wfc_ref[p],
                            preferred_element_type=jnp.float32)
    o_ref[0] = jnp.maximum(acc + bfc_ref[...], 0.0)                  # (1, F) f32


# ------------------------------- JAX glue -------------------------------------
def _im2col(x_nhwc, k, stride):
    """conv1 patches: (N, Ho*Wo, k*k*C), tap-major / channel-minor order."""
    n, h, w, c = x_nhwc.shape
    ho = _conv_out(h, k, stride)
    wo = _conv_out(w, k, stride)
    cols = []
    for i in range(k):
        for j in range(k):
            cols.append(jax.lax.slice(
                x_nhwc, (0, i, j, 0),
                (n, i + stride * (ho - 1) + 1, j + stride * (wo - 1) + 1, c),
                (1, stride, stride, 1)))            # (N, Ho, Wo, C)
    patches = jnp.stack(cols, axis=3)               # (N, Ho, Wo, k*k, C)
    return patches.reshape(n, ho * wo, k * k * c)


def _selection_matrices(h_in, w_in, k, stride):
    """S[t, p_out, p_in] = 1 iff conv output position p_out, tap t=(i*k+j)
    reads spatial position p_in of the (h_in*w_in, C) flattened input."""
    ho = _conv_out(h_in, k, stride)
    wo = _conv_out(w_in, k, stride)
    s = np.zeros((k * k, ho * wo, h_in * w_in), dtype=np.float32)
    for i in range(k):
        for j in range(k):
            for oh in range(ho):
                for ow in range(wo):
                    s[i * k + j, oh * wo + ow,
                      (oh * stride + i) * w_in + (ow * stride + j)] = 1.0
    return s, (ho, wo)


def prepare_params(params, input_hw):
    """One-time weight layout prep (hoisted out of the per-call forward path)."""
    h, w = input_hw
    (k1, s1), (k2, s2), (k3, s3) = _CONV_CFG
    w1, w2, w3, wfc = params["w1"], params["w2"], params["w3"], params["w_fc"]
    c1, c_in = w1.shape[0], w1.shape[1]
    c2, c3 = w2.shape[0], w3.shape[0]
    feat = wfc.shape[0]

    ho1, wo1 = _conv_out(h, k1, s1), _conv_out(w, k1, s1)
    s2m, (ho2, wo2) = _selection_matrices(ho1, wo1, k2, s2)
    s3m, (ho3, wo3) = _selection_matrices(ho2, wo2, k3, s3)
    p3 = ho3 * wo3
    assert wfc.shape[1] == c3 * p3, (wfc.shape, c3, p3)

    def bf16(x):
        return jnp.asarray(x, dtype=jnp.bfloat16)

    def bias(x):
        return jnp.asarray(x, dtype=jnp.float32).reshape(1, -1)

    # Conv weights -> tap-major GEMM layouts: (Cout,Cin,KH,KW) -> (KH,KW,Cin,Cout).
    w1m = bf16(jnp.transpose(w1, (2, 3, 1, 0)).reshape(k1 * k1 * c_in, c1))
    w2t = bf16(jnp.transpose(w2, (2, 3, 1, 0)).reshape(k2 * k2, c1, c2))
    w3t = bf16(jnp.transpose(w3, (2, 3, 1, 0)).reshape(k3 * k3, c2, c3))
    # FC weight with torch's NCHW flatten index (c*P3 + p) folded into layout:
    # (F, C3*P3) -> (P3, C3, F).
    wfcp = bf16(jnp.transpose(wfc.reshape(feat, c3, p3), (2, 1, 0)))

    return dict(
        w1m=w1m, b1=bias(params["b1"]),
        s2=bf16(s2m), w2t=w2t, b2=bias(params["b2"]),
        s3=bf16(s3m), w3t=w3t, b3=bias(params["b3"]),
        wfc=wfcp, bfc=bias(params["b_fc"]),
    )


@jax.jit
def nature_cnn_forward(prep, obs_nchw):
    """Forward pass of NatureCNN.  obs_nchw: (N, C, H, W) float32."""
    k1, s1 = _CONV_CFG[0]
    x = jnp.transpose(obs_nchw, (0, 2, 3, 1)).astype(jnp.bfloat16)   # NCHW->NHWC
    patches = _im2col(x, k1, s1)                                     # (N, P1, K1)
    n, p1, k1dim = patches.shape
    c1 = prep["w1m"].shape[1]
    t2, p2, _ = prep["s2"].shape
    c2 = prep["w2t"].shape[-1]
    t3, p3, _ = prep["s3"].shape
    c3 = prep["w3t"].shape[-1]
    feat = prep["bfc"].shape[-1]

    flops = 2 * n * (p1 * k1dim * c1
                     + t2 * (p2 * p1 * c1 + p2 * c1 * c2)
                     + t3 * (p3 * p2 * c2 + p3 * c2 * c3)
                     + p3 * c3 * feat)
    weight_bytes = sum(int(v.size) * int(v.dtype.itemsize) for v in prep.values())
    bytes_accessed = int(patches.size) * 2 + weight_bytes + n * feat * 4

    out = pl.pallas_call(
        _nature_cnn_kernel,
        out_shape=jax.ShapeDtypeStruct((n, 1, feat), jnp.float32),
        grid_spec=pltpu.PrefetchScalarGridSpec(
            num_scalar_prefetch=0,
            grid=(n,),                                   # one image per step
            in_specs=[
                pl.BlockSpec((1, p1, k1dim), lambda b: (b, 0, 0)),
                # Weights / selection matrices / biases stay VMEM-resident.
                pl.BlockSpec(prep["w1m"].shape, lambda b: (0, 0)),
                pl.BlockSpec(prep["b1"].shape, lambda b: (0, 0)),
                pl.BlockSpec(prep["s2"].shape, lambda b: (0, 0, 0)),
                pl.BlockSpec(prep["w2t"].shape, lambda b: (0, 0, 0)),
                pl.BlockSpec(prep["b2"].shape, lambda b: (0, 0)),
                pl.BlockSpec(prep["s3"].shape, lambda b: (0, 0, 0)),
                pl.BlockSpec(prep["w3t"].shape, lambda b: (0, 0, 0)),
                pl.BlockSpec(prep["b3"].shape, lambda b: (0, 0)),
                pl.BlockSpec(prep["wfc"].shape, lambda b: (0, 0, 0)),
                pl.BlockSpec(prep["bfc"].shape, lambda b: (0, 0)),
            ],
            out_specs=pl.BlockSpec((1, 1, feat), lambda b: (b, 0, 0)),
        ),
        compiler_params=pltpu.CompilerParams(
            dimension_semantics=("parallel",),           # megacore batch split
            vmem_limit_bytes=32 * 1024 * 1024,
        ),
        cost_estimate=pl.CostEstimate(
            flops=int(flops), transcendentals=0,
            bytes_accessed=int(bytes_accessed)),
    )(patches, prep["w1m"], prep["b1"],
      prep["s2"], prep["w2t"], prep["b2"],
      prep["s3"], prep["w3t"], prep["b3"],
      prep["wfc"], prep["bfc"])
    return out.reshape(n, feat)


# ------------------------- reference & init (host) ---------------------------
def nature_cnn_reference(params, obs_nchw):
    """Pure-JAX f32 reference matching the PyTorch module."""
    x = obs_nchw.astype(jnp.float32)

    def conv(x, w, b, stride):
        y = jax.lax.conv_general_dilated(
            x, w, window_strides=(stride, stride), padding="VALID",
            dimension_numbers=("NCHW", "OIHW", "NCHW"))
        return jnp.maximum(y + b.reshape(1, -1, 1, 1), 0.0)

    x = conv(x, params["w1"], params["b1"], 4)
    x = conv(x, params["w2"], params["b2"], 2)
    x = conv(x, params["w3"], params["b3"], 1)
    x = x.reshape(x.shape[0], -1)                        # NCHW flatten
    return jnp.maximum(x @ params["w_fc"].T + params["b_fc"], 0.0)


def init_params(key, n_input_channels, n_flatten, features_dim):
    """Deterministic synthetic parameters, torch layout shapes."""
    ks = jax.random.split(key, 8)

    def w(k, shape, scale=0.05):
        return scale * jax.random.normal(k, shape, dtype=jnp.float32)

    return dict(
        w1=w(ks[0], (32, n_input_channels, 8, 8)),
        b1=w(ks[1], (32,)),
        w2=w(ks[2], (64, 32, 4, 4)),
        b2=w(ks[3], (64,)),
        w3=w(ks[4], (64, 64, 3, 3)),
        b3=w(ks[5], (64,)),
        w_fc=w(ks[6], (features_dim, n_flatten)),
        b_fc=w(ks[7], (features_dim,)),
    )


if __name__ == "__main__":
    key = jax.random.PRNGKey(0)
    k_obs, k_params = jax.random.split(key)

    # Small observation_space: Box with shape (C=4, H=36, W=36); batch = 2.
    N, C, H, W = 2, 4, 36, 36
    features_dim = 512                                   # module default

    # Mirror the torch.no_grad() n_flatten shape probe analytically.
    ho = _conv_out(_conv_out(_conv_out(H, 8, 4), 4, 2), 3, 1)
    wo = _conv_out(_conv_out(_conv_out(W, 8, 4), 4, 2), 3, 1)
    n_flatten = 64 * ho * wo

    params = init_params(k_params, C, n_flatten, features_dim)
    obs = jax.random.normal(k_obs, (N, C, H, W), dtype=jnp.float32)

    prep = prepare_params(params, (H, W))                # one-time layout prep
    out = jax.block_until_ready(nature_cnn_forward(prep, obs))

    assert out.shape == (N, features_dim), out.shape
    assert bool(jnp.all(out >= 0.0))                     # final ReLU

    # Correctness vs. pure-JAX f32 reference (bf16 MXU operands -> loose tol).
    ref = nature_cnn_reference(params, obs)
    np.testing.assert_allclose(np.asarray(out), np.asarray(ref),
                               rtol=5e-2, atol=5e-2)
    print("KERNEL_OK")
</pallas_src>

<mosaic_0001>
module attributes {stable_mosaic.version = 11 : i64} {
  func.func @_nature_cnn_kernel(%arg0: i32, %arg1: memref<1x64x256xbf16, #tpu.memory_space<vmem>>, %arg2: memref<256x32xbf16, #tpu.memory_space<vmem>>, %arg3: memref<1x32xf32, #tpu.memory_space<vmem>>, %arg4: memref<16x9x64xbf16, #tpu.memory_space<vmem>>, %arg5: memref<16x32x64xbf16, #tpu.memory_space<vmem>>, %arg6: memref<1x64xf32, #tpu.memory_space<vmem>>, %arg7: memref<9x1x9xbf16, #tpu.memory_space<vmem>>, %arg8: memref<9x64x64xbf16, #tpu.memory_space<vmem>>, %arg9: memref<1x64xf32, #tpu.memory_space<vmem>>, %arg10: memref<1x64x512xbf16, #tpu.memory_space<vmem>>, %arg11: memref<1x512xf32, #tpu.memory_space<vmem>>, %arg12: memref<1x1x512xf32, #tpu.memory_space<vmem>>) attributes {dimension_semantics = [#tpu.dimension_semantics<parallel>], iteration_bounds = array<i64: 2>, scalar_prefetch = 0 : i64, scratch_operands = 0 : i64, tpu.core_type = #tpu.core_type<tc>, window_params = [{transform_indices = @transform_0, window_bounds = array<i64: 1, 64, 256>}, {pipeline_mode = #tpu.pipeline_mode<synchronous>, transform_indices = @transform_1, window_bounds = array<i64: 256, 32>}, {pipeline_mode = #tpu.pipeline_mode<synchronous>, transform_indices = @transform_2, window_bounds = array<i64: 1, 32>}, {pipeline_mode = #tpu.pipeline_mode<synchronous>, transform_indices = @transform_3, window_bounds = array<i64: 16, 9, 64>}, {pipeline_mode = #tpu.pipeline_mode<synchronous>, transform_indices = @transform_4, window_bounds = array<i64: 16, 32, 64>}, {pipeline_mode = #tpu.pipeline_mode<synchronous>, transform_indices = @transform_5, window_bounds = array<i64: 1, 64>}, {pipeline_mode = #tpu.pipeline_mode<synchronous>, transform_indices = @transform_6, window_bounds = array<i64: 9, 1, 9>}, {pipeline_mode = #tpu.pipeline_mode<synchronous>, transform_indices = @transform_7, window_bounds = array<i64: 9, 64, 64>}, {pipeline_mode = #tpu.pipeline_mode<synchronous>, transform_indices = @transform_8, window_bounds = array<i64: 1, 64>}, {pipeline_mode = #tpu.pipeline_mode<synchronous>, transform_indices = @transform_9, window_bounds = array<i64: 1, 64, 512>}, {pipeline_mode = #tpu.pipeline_mode<synchronous>, transform_indices = @transform_10, window_bounds = array<i64: 1, 512>}, {transform_indices = @transform_11, window_bounds = array<i64: 1, 1, 512>}]} {
    %c0 = arith.constant 0 : index
    %c0_0 = arith.constant 0 : index
    %c0_1 = arith.constant 0 : index
    %0 = vector.load %arg1[%c0, %c0_0, %c0_1] : memref<1x64x256xbf16, #tpu.memory_space<vmem>>, vector<1x64x256xbf16>
    %1 = vector.shape_cast %0 : vector<1x64x256xbf16> to vector<64x256xbf16>
    %c0_2 = arith.constant 0 : index
    %c0_3 = arith.constant 0 : index
    %2 = vector.load %arg2[%c0_2, %c0_3] : memref<256x32xbf16, #tpu.memory_space<vmem>>, vector<256x32xbf16>
    %cst = arith.constant dense<0.000000e+00> : vector<64x32xf32>
    %3 = tpu.matmul %1, %2, %cst {dimension_numbers = #tpu.dot_dimension_numbers<[1], [0], [0], [1], [0, 0, 1, 1], [], []>} : vector<64x256xbf16>, vector<256x32xbf16>, vector<64x32xf32> -> vector<64x32xf32>
    %c0_4 = arith.constant 0 : index
    %c0_5 = arith.constant 0 : index
    %4 = vector.load %arg3[%c0_4, %c0_5] : memref<1x32xf32, #tpu.memory_space<vmem>>, vector<1x32xf32>
    %5 = vector.broadcast %4 : vector<1x32xf32> to vector<64x32xf32>
    %6 = arith.addf %3, %5 : vector<64x32xf32>
    %cst_6 = arith.constant 0.000000e+00 : f32
    %7 = vector.broadcast %cst_6 : f32 to vector<64x32xf32>
    %8 = arith.maximumf %6, %7 : vector<64x32xf32>
    %9 = arith.truncf %8 : vector<64x32xf32> to vector<64x32xbf16>
    %cst_7 = arith.constant 0.000000e+00 : f32
    %10 = vector.broadcast %cst_7 : f32 to vector<9x64xf32>
    %c0_8 = arith.constant 0 : index
    %c0_9 = arith.constant 0 : index
    %c0_10 = arith.constant 0 : index
    %11 = vector.load %arg4[%c0_8, %c0_9, %c0_10] : memref<16x9x64xbf16, #tpu.memory_space<vmem>>, vector<1x9x64xbf16>
    %12 = vector.shape_cast %11 : vector<1x9x64xbf16> to vector<9x64xbf16>
    %cst_11 = arith.constant dense<0.000000e+00> : vector<9x32xf32>
    %13 = tpu.matmul %12, %9, %cst_11 {dimension_numbers = #tpu.dot_dimension_numbers<[1], [0], [0], [1], [0, 0, 1, 1], [], []>} : vector<9x64xbf16>, vector<64x32xbf16>, vector<9x32xf32> -> vector<9x32xf32>
    %14 = arith.truncf %13 : vector<9x32xf32> to vector<9x32xbf16>
    %c0_12 = arith.constant 0 : index
    %c0_13 = arith.constant 0 : index
    %c0_14 = arith.constant 0 : index
    %15 = vector.load %arg5[%c0_12, %c0_13, %c0_14] : memref<16x32x64xbf16, #tpu.memory_space<vmem>>, vector<1x32x64xbf16>
    %16 = vector.shape_cast %15 : vector<1x32x64xbf16> to vector<32x64xbf16>
    %cst_15 = arith.constant dense<0.000000e+00> : vector<9x64xf32>
    %17 = tpu.matmul %14, %16, %cst_15 {dimension_numbers = #tpu.dot_dimension_numbers<[1], [0], [0], [1], [0, 0, 1, 1], [], []>} : vector<9x32xbf16>, vector<32x64xbf16>, vector<9x64xf32> -> vector<9x64xf32>
    %18 = arith.addf %10, %17 : vector<9x64xf32>
    %c1 = arith.constant 1 : index
    %c0_16 = arith.constant 0 : index
    %c0_17 = arith.constant 0 : index
    %19 = vector.load %arg4[%c1, %c0_16, %c0_17] : memref<16x9x64xbf16, #tpu.memory_space<vmem>>, vector<1x9x64xbf16>
    %20 = vector.shape_cast %19 : vector<1x9x64xbf16> to vector<9x64xbf16>
    %cst_18 = arith.constant dense<0.000000e+00> : vector<9x32xf32>
    %21 = tpu.matmul %20, %9, %cst_18 {dimension_numbers = #tpu.dot_dimension_numbers<[1], [0], [0], [1], [0, 0, 1, 1], [], []>} : vector<9x64xbf16>, vector<64x32xbf16>, vector<9x32xf32> -> vector<9x32xf32>
    %22 = arith.truncf %21 : vector<9x32xf32> to vector<9x32xbf16>
    %c1_19 = arith.constant 1 : index
    %c0_20 = arith.constant 0 : index
    %c0_21 = arith.constant 0 : index
    %23 = vector.load %arg5[%c1_19, %c0_20, %c0_21] : memref<16x32x64xbf16, #tpu.memory_space<vmem>>, vector<1x32x64xbf16>
    %24 = vector.shape_cast %23 : vector<1x32x64xbf16> to vector<32x64xbf16>
    %cst_22 = arith.constant dense<0.000000e+00> : vector<9x64xf32>
    %25 = tpu.matmul %22, %24, %cst_22 {dimension_numbers = #tpu.dot_dimension_numbers<[1], [0], [0], [1], [0, 0, 1, 1], [], []>} : vector<9x32xbf16>, vector<32x64xbf16>, vector<9x64xf32> -> vector<9x64xf32>
    %26 = arith.addf %18, %25 : vector<9x64xf32>
    %c2 = arith.constant 2 : index
    %c0_23 = arith.constant 0 : index
    %c0_24 = arith.constant 0 : index
    %27 = vector.load %arg4[%c2, %c0_23, %c0_24] : memref<16x9x64xbf16, #tpu.memory_space<vmem>>, vector<1x9x64xbf16>
    %28 = vector.shape_cast %27 : vector<1x9x64xbf16> to vector<9x64xbf16>
    %cst_25 = arith.constant dense<0.000000e+00> : vector<9x32xf32>
    %29 = tpu.matmul %28, %9, %cst_25 {dimension_numbers = #tpu.dot_dimension_numbers<[1], [0], [0], [1], [0, 0, 1, 1], [], []>} : vector<9x64xbf16>, vector<64x32xbf16>, vector<9x32xf32> -> vector<9x32xf32>
    %30 = arith.truncf %29 : vector<9x32xf32> to vector<9x32xbf16>
    %c2_26 = arith.constant 2 : index
    %c0_27 = arith.constant 0 : index
    %c0_28 = arith.constant 0 : index
    %31 = vector.load %arg5[%c2_26, %c0_27, %c0_28] : memref<16x32x64xbf16, #tpu.memory_space<vmem>>, vector<1x32x64xbf16>
    %32 = vector.shape_cast %31 : vector<1x32x64xbf16> to vector<32x64xbf16>
    %cst_29 = arith.constant dense<0.000000e+00> : vector<9x64xf32>
    %33 = tpu.matmul %30, %32, %cst_29 {dimension_numbers = #tpu.dot_dimension_numbers<[1], [0], [0], [1], [0, 0, 1, 1], [], []>} : vector<9x32xbf16>, vector<32x64xbf16>, vector<9x64xf32> -> vector<9x64xf32>
    %34 = arith.addf %26, %33 : vector<9x64xf32>
    %c3 = arith.constant 3 : index
    %c0_30 = arith.constant 0 : index
    %c0_31 = arith.constant 0 : index
    %35 = vector.load %arg4[%c3, %c0_30, %c0_31] : memref<16x9x64xbf16, #tpu.memory_space<vmem>>, vector<1x9x64xbf16>
    %36 = vector.shape_cast %35 : vector<1x9x64xbf16> to vector<9x64xbf16>
    %cst_32 = arith.constant dense<0.000000e+00> : vector<9x32xf32>
    %37 = tpu.matmul %36, %9, %cst_32 {dimension_numbers = #tpu.dot_dimension_numbers<[1], [0], [0], [1], [0, 0, 1, 1], [], []>} : vector<9x64xbf16>, vector<64x32xbf16>, vector<9x32xf32> -> vector<9x32xf32>
    %38 = arith.truncf %37 : vector<9x32xf32> to vector<9x32xbf16>
    %c3_33 = arith.constant 3 : index
    %c0_34 = arith.constant 0 : index
    %c0_35 = arith.constant 0 : index
    %39 = vector.load %arg5[%c3_33, %c0_34, %c0_35] : memref<16x32x64xbf16, #tpu.memory_space<vmem>>, vector<1x32x64xbf16>
    %40 = vector.shape_cast %39 : vector<1x32x64xbf16> to vector<32x64xbf16>
    %cst_36 = arith.constant dense<0.000000e+00> : vector<9x64xf32>
    %41 = tpu.matmul %38, %40, %cst_36 {dimension_numbers = #tpu.dot_dimension_numbers<[1], [0], [0], [1], [0, 0, 1, 1], [], []>} : vector<9x32xbf16>, vector<32x64xbf16>, vector<9x64xf32> -> vector<9x64xf32>
    %42 = arith.addf %34, %41 : vector<9x64xf32>
    %c4 = arith.constant 4 : index
    %c0_37 = arith.constant 0 : index
    %c0_38 = arith.constant 0 : index
    %43 = vector.load %arg4[%c4, %c0_37, %c0_38] : memref<16x9x64xbf16, #tpu.memory_space<vmem>>, vector<1x9x64xbf16>
    %44 = vector.shape_cast %43 : vector<1x9x64xbf16> to vector<9x64xbf16>
    %cst_39 = arith.constant dense<0.000000e+00> : vector<9x32xf32>
    %45 = tpu.matmul %44, %9, %cst_39 {dimension_numbers = #tpu.dot_dimension_numbers<[1], [0], [0], [1], [0, 0, 1, 1], [], []>} : vector<9x64xbf16>, vector<64x32xbf16>, vector<9x32xf32> -> vector<9x32xf32>
    %46 = arith.truncf %45 : vector<9x32xf32> to vector<9x32xbf16>
    %c4_40 = arith.constant 4 : index
    %c0_41 = arith.constant 0 : index
    %c0_42 = arith.constant 0 : index
    %47 = vector.load %arg5[%c4_40, %c0_41, %c0_42] : memref<16x32x64xbf16, #tpu.memory_space<vmem>>, vector<1x32x64xbf16>
    %48 = vector.shape_cast %47 : vector<1x32x64xbf16> to vector<32x64xbf16>
    %cst_43 = arith.constant dense<0.000000e+00> : vector<9x64xf32>
    %49 = tpu.matmul %46, %48, %cst_43 {dimension_numbers = #tpu.dot_dimension_numbers<[1], [0], [0], [1], [0, 0, 1, 1], [], []>} : vector<9x32xbf16>, vector<32x64xbf16>, vector<9x64xf32> -> vector<9x64xf32>
    %50 = arith.addf %42, %49 : vector<9x64xf32>
    %c5 = arith.constant 5 : index
    %c0_44 = arith.constant 0 : index
    %c0_45 = arith.constant 0 : index
    %51 = vector.load %arg4[%c5, %c0_44, %c0_45] : memref<16x9x64xbf16, #tpu.memory_space<vmem>>, vector<1x9x64xbf16>
    %52 = vector.shape_cast %51 : vector<1x9x64xbf16> to vector<9x64xbf16>
    %cst_46 = arith.constant dense<0.000000e+00> : vector<9x32xf32>
    %53 = tpu.matmul %52, %9, %cst_46 {dimension_numbers = #tpu.dot_dimension_numbers<[1], [0], [0], [1], [0, 0, 1, 1], [], []>} : vector<9x64xbf16>, vector<64x32xbf16>, vector<9x32xf32> -> vector<9x32xf32>
    %54 = arith.truncf %53 : vector<9x32xf32> to vector<9x32xbf16>
    %c5_47 = arith.constant 5 : index
    %c0_48 = arith.constant 0 : index
    %c0_49 = arith.constant 0 : index
    %55 = vector.load %arg5[%c5_47, %c0_48, %c0_49] : memref<16x32x64xbf16, #tpu.memory_space<vmem>>, vector<1x32x64xbf16>
    %56 = vector.shape_cast %55 : vector<1x32x64xbf16> to vector<32x64xbf16>
    %cst_50 = arith.constant dense<0.000000e+00> : vector<9x64xf32>
    %57 = tpu.matmul %54, %56, %cst_50 {dimension_numbers = #tpu.dot_dimension_numbers<[1], [0], [0], [1], [0, 0, 1, 1], [], []>} : vector<9x32xbf16>, vector<32x64xbf16>, vector<9x64xf32> -> vector<9x64xf32>
    %58 = arith.addf %50, %57 : vector<9x64xf32>
    %c6 = arith.constant 6 : index
    %c0_51 = arith.constant 0 : index
    %c0_52 = arith.constant 0 : index
    %59 = vector.load %arg4[%c6, %c0_51, %c0_52] : memref<16x9x64xbf16, #tpu.memory_space<vmem>>, vector<1x9x64xbf16>
    %60 = vector.shape_cast %59 : vector<1x9x64xbf16> to vector<9x64xbf16>
    %cst_53 = arith.constant dense<0.000000e+00> : vector<9x32xf32>
    %61 = tpu.matmul %60, %9, %cst_53 {dimension_numbers = #tpu.dot_dimension_numbers<[1], [0], [0], [1], [0, 0, 1, 1], [], []>} : vector<9x64xbf16>, vector<64x32xbf16>, vector<9x32xf32> -> vector<9x32xf32>
    %62 = arith.truncf %61 : vector<9x32xf32> to vector<9x32xbf16>
    %c6_54 = arith.constant 6 : index
    %c0_55 = arith.constant 0 : index
    %c0_56 = arith.constant 0 : index
    %63 = vector.load %arg5[%c6_54, %c0_55, %c0_56] : memref<16x32x64xbf16, #tpu.memory_space<vmem>>, vector<1x32x64xbf16>
    %64 = vector.shape_cast %63 : vector<1x32x64xbf16> to vector<32x64xbf16>
    %cst_57 = arith.constant dense<0.000000e+00> : vector<9x64xf32>
    %65 = tpu.matmul %62, %64, %cst_57 {dimension_numbers = #tpu.dot_dimension_numbers<[1], [0], [0], [1], [0, 0, 1, 1], [], []>} : vector<9x32xbf16>, vector<32x64xbf16>, vector<9x64xf32> -> vector<9x64xf32>
    %66 = arith.addf %58, %65 : vector<9x64xf32>
    %c7 = arith.constant 7 : index
    %c0_58 = arith.constant 0 : index
    %c0_59 = arith.constant 0 : index
    %67 = vector.load %arg4[%c7, %c0_58, %c0_59] : memref<16x9x64xbf16, #tpu.memory_space<vmem>>, vector<1x9x64xbf16>
    %68 = vector.shape_cast %67 : vector<1x9x64xbf16> to vector<9x64xbf16>
    %cst_60 = arith.constant dense<0.000000e+00> : vector<9x32xf32>
    %69 = tpu.matmul %68, %9, %cst_60 {dimension_numbers = #tpu.dot_dimension_numbers<[1], [0], [0], [1], [0, 0, 1, 1], [], []>} : vector<9x64xbf16>, vector<64x32xbf16>, vector<9x32xf32> -> vector<9x32xf32>
    %70 = arith.truncf %69 : vector<9x32xf32> to vector<9x32xbf16>
    %c7_61 = arith.constant 7 : index
    %c0_62 = arith.constant 0 : index
    %c0_63 = arith.constant 0 : index
    %71 = vector.load %arg5[%c7_61, %c0_62, %c0_63] : memref<16x32x64xbf16, #tpu.memory_space<vmem>>, vector<1x32x64xbf16>
    %72 = vector.shape_cast %71 : vector<1x32x64xbf16> to vector<32x64xbf16>
    %cst_64 = arith.constant dense<0.000000e+00> : vector<9x64xf32>
    %73 = tpu.matmul %70, %72, %cst_64 {dimension_numbers = #tpu.dot_dimension_numbers<[1], [0], [0], [1], [0, 0, 1, 1], [], []>} : vector<9x32xbf16>, vector<32x64xbf16>, vector<9x64xf32> -> vector<9x64xf32>
    %74 = arith.addf %66, %73 : vector<9x64xf32>
    %c8 = arith.constant 8 : index
    %c0_65 = arith.constant 0 : index
    %c0_66 = arith.constant 0 : index
    %75 = vector.load %arg4[%c8, %c0_65, %c0_66] : memref<16x9x64xbf16, #tpu.memory_space<vmem>>, vector<1x9x64xbf16>
    %76 = vector.shape_cast %75 : vector<1x9x64xbf16> to vector<9x64xbf16>
    %cst_67 = arith.constant dense<0.000000e+00> : vector<9x32xf32>
    %77 = tpu.matmul %76, %9, %cst_67 {dimension_numbers = #tpu.dot_dimension_numbers<[1], [0], [0], [1], [0, 0, 1, 1], [], []>} : vector<9x64xbf16>, vector<64x32xbf16>, vector<9x32xf32> -> vector<9x32xf32>
    %78 = arith.truncf %77 : vector<9x32xf32> to vector<9x32xbf16>
    %c8_68 = arith.constant 8 : index
    %c0_69 = arith.constant 0 : index
    %c0_70 = arith.constant 0 : index
    %79 = vector.load %arg5[%c8_68, %c0_69, %c0_70] : memref<16x32x64xbf16, #tpu.memory_space<vmem>>, vector<1x32x64xbf16>
    %80 = vector.shape_cast %79 : vector<1x32x64xbf16> to vector<32x64xbf16>
    %cst_71 = arith.constant dense<0.000000e+00> : vector<9x64xf32>
    %81 = tpu.matmul %78, %80, %cst_71 {dimension_numbers = #tpu.dot_dimension_numbers<[1], [0], [0], [1], [0, 0, 1, 1], [], []>} : vector<9x32xbf16>, vector<32x64xbf16>, vector<9x64xf32> -> vector<9x64xf32>
    %82 = arith.addf %74, %81 : vector<9x64xf32>
    %c9 = arith.constant 9 : index
    %c0_72 = arith.constant 0 : index
    %c0_73 = arith.constant 0 : index
    %83 = vector.load %arg4[%c9, %c0_72, %c0_73] : memref<16x9x64xbf16, #tpu.memory_space<vmem>>, vector<1x9x64xbf16>
    %84 = vector.shape_cast %83 : vector<1x9x64xbf16> to vector<9x64xbf16>
    %cst_74 = arith.constant dense<0.000000e+00> : vector<9x32xf32>
    %85 = tpu.matmul %84, %9, %cst_74 {dimension_numbers = #tpu.dot_dimension_numbers<[1], [0], [0], [1], [0, 0, 1, 1], [], []>} : vector<9x64xbf16>, vector<64x32xbf16>, vector<9x32xf32> -> vector<9x32xf32>
    %86 = arith.truncf %85 : vector<9x32xf32> to vector<9x32xbf16>
    %c9_75 = arith.constant 9 : index
    %c0_76 = arith.constant 0 : index
    %c0_77 = arith.constant 0 : index
    %87 = vector.load %arg5[%c9_75, %c0_76, %c0_77] : memref<16x32x64xbf16, #tpu.memory_space<vmem>>, vector<1x32x64xbf16>
    %88 = vector.shape_cast %87 : vector<1x32x64xbf16> to vector<32x64xbf16>
    %cst_78 = arith.constant dense<0.000000e+00> : vector<9x64xf32>
    %89 = tpu.matmul %86, %88, %cst_78 {dimension_numbers = #tpu.dot_dimension_numbers<[1], [0], [0], [1], [0, 0, 1, 1], [], []>} : vector<9x32xbf16>, vector<32x64xbf16>, vector<9x64xf32> -> vector<9x64xf32>
    %90 = arith.addf %82, %89 : vector<9x64xf32>
    %c10 = arith.constant 10 : index
    %c0_79 = arith.constant 0 : index
    %c0_80 = arith.constant 0 : index
    %91 = vector.load %arg4[%c10, %c0_79, %c0_80] : memref<16x9x64xbf16, #tpu.memory_space<vmem>>, vector<1x9x64xbf16>
    %92 = vector.shape_cast %91 : vector<1x9x64xbf16> to vector<9x64xbf16>
    %cst_81 = arith.constant dense<0.000000e+00> : vector<9x32xf32>
    %93 = tpu.matmul %92, %9, %cst_81 {dimension_numbers = #tpu.dot_dimension_numbers<[1], [0], [0], [1], [0, 0, 1, 1], [], []>} : vector<9x64xbf16>, vector<64x32xbf16>, vector<9x32xf32> -> vector<9x32xf32>
    %94 = arith.truncf %93 : vector<9x32xf32> to vector<9x32xbf16>
    %c10_82 = arith.constant 10 : index
    %c0_83 = arith.constant 0 : index
    %c0_84 = arith.constant 0 : index
    %95 = vector.load %arg5[%c10_82, %c0_83, %c0_84] : memref<16x32x64xbf16, #tpu.memory_space<vmem>>, vector<1x32x64xbf16>
    %96 = vector.shape_cast %95 : vector<1x32x64xbf16> to vector<32x64xbf16>
    %cst_85 = arith.constant dense<0.000000e+00> : vector<9x64xf32>
    %97 = tpu.matmul %94, %96, %cst_85 {dimension_numbers = #tpu.dot_dimension_numbers<[1], [0], [0], [1], [0, 0, 1, 1], [], []>} : vector<9x32xbf16>, vector<32x64xbf16>, vector<9x64xf32> -> vector<9x64xf32>
    %98 = arith.addf %90, %97 : vector<9x64xf32>
    %c11 = arith.constant 11 : index
    %c0_86 = arith.constant 0 : index
    %c0_87 = arith.constant 0 : index
    %99 = vector.load %arg4[%c11, %c0_86, %c0_87] : memref<16x9x64xbf16, #tpu.memory_space<vmem>>, vector<1x9x64xbf16>
    %100 = vector.shape_cast %99 : vector<1x9x64xbf16> to vector<9x64xbf16>
    %cst_88 = arith.constant dense<0.000000e+00> : vector<9x32xf32>
    %101 = tpu.matmul %100, %9, %cst_88 {dimension_numbers = #tpu.dot_dimension_numbers<[1], [0], [0], [1], [0, 0, 1, 1], [], []>} : vector<9x64xbf16>, vector<64x32xbf16>, vector<9x32xf32> -> vector<9x32xf32>
    %102 = arith.truncf %101 : vector<9x32xf32> to vector<9x32xbf16>
    %c11_89 = arith.constant 11 : index
    %c0_90 = arith.constant 0 : index
    %c0_91 = arith.constant 0 : index
    %103 = vector.load %arg5[%c11_89, %c0_90, %c0_91] : memref<16x32x64xbf16, #tpu.memory_space<vmem>>, vector<1x32x64xbf16>
    %104 = vector.shape_cast %103 : vector<1x32x64xbf16> to vector<32x64xbf16>
    %cst_92 = arith.constant dense<0.000000e+00> : vector<9x64xf32>
    %105 = tpu.matmul %102, %104, %cst_92 {dimension_numbers = #tpu.dot_dimension_numbers<[1], [0], [0], [1], [0, 0, 1, 1], [], []>} : vector<9x32xbf16>, vector<32x64xbf16>, vector<9x64xf32> -> vector<9x64xf32>
    %106 = arith.addf %98, %105 : vector<9x64xf32>
    %c12 = arith.constant 12 : index
    %c0_93 = arith.constant 0 : index
    %c0_94 = arith.constant 0 : index
    %107 = vector.load %arg4[%c12, %c0_93, %c0_94] : memref<16x9x64xbf16, #tpu.memory_space<vmem>>, vector<1x9x64xbf16>
    %108 = vector.shape_cast %107 : vector<1x9x64xbf16> to vector<9x64xbf16>
    %cst_95 = arith.constant dense<0.000000e+00> : vector<9x32xf32>
    %109 = tpu.matmul %108, %9, %cst_95 {dimension_numbers = #tpu.dot_dimension_numbers<[1], [0], [0], [1], [0, 0, 1, 1], [], []>} : vector<9x64xbf16>, vector<64x32xbf16>, vector<9x32xf32> -> vector<9x32xf32>
    %110 = arith.truncf %109 : vector<9x32xf32> to vector<9x32xbf16>
    %c12_96 = arith.constant 12 : index
    %c0_97 = arith.constant 0 : index
    %c0_98 = arith.constant 0 : index
    %111 = vector.load %arg5[%c12_96, %c0_97, %c0_98] : memref<16x32x64xbf16, #tpu.memory_space<vmem>>, vector<1x32x64xbf16>
    %112 = vector.shape_cast %111 : vector<1x32x64xbf16> to vector<32x64xbf16>
    %cst_99 = arith.constant dense<0.000000e+00> : vector<9x64xf32>
    %113 = tpu.matmul %110, %112, %cst_99 {dimension_numbers = #tpu.dot_dimension_numbers<[1], [0], [0], [1], [0, 0, 1, 1], [], []>} : vector<9x32xbf16>, vector<32x64xbf16>, vector<9x64xf32> -> vector<9x64xf32>
    %114 = arith.addf %106, %113 : vector<9x64xf32>
    %c13 = arith.constant 13 : index
    %c0_100 = arith.constant 0 : index
    %c0_101 = arith.constant 0 : index
    %115 = vector.load %arg4[%c13, %c0_100, %c0_101] : memref<16x9x64xbf16, #tpu.memory_space<vmem>>, vector<1x9x64xbf16>
    %116 = vector.shape_cast %115 : vector<1x9x64xbf16> to vector<9x64xbf16>
    %cst_102 = arith.constant dense<0.000000e+00> : vector<9x32xf32>
    %117 = tpu.matmul %116, %9, %cst_102 {dimension_numbers = #tpu.dot_dimension_numbers<[1], [0], [0], [1], [0, 0, 1, 1], [], []>} : vector<9x64xbf16>, vector<64x32xbf16>, vector<9x32xf32> -> vector<9x32xf32>
    %118 = arith.truncf %117 : vector<9x32xf32> to vector<9x32xbf16>
    %c13_103 = arith.constant 13 : index
    %c0_104 = arith.constant 0 : index
    %c0_105 = arith.constant 0 : index
    %119 = vector.load %arg5[%c13_103, %c0_104, %c0_105] : memref<16x32x64xbf16, #tpu.memory_space<vmem>>, vector<1x32x64xbf16>
    %120 = vector.shape_cast %119 : vector<1x32x64xbf16> to vector<32x64xbf16>
    %cst_106 = arith.constant dense<0.000000e+00> : vector<9x64xf32>
    %121 = tpu.matmul %118, %120, %cst_106 {dimension_numbers = #tpu.dot_dimension_numbers<[1], [0], [0], [1], [0, 0, 1, 1], [], []>} : vector<9x32xbf16>, vector<32x64xbf16>, vector<9x64xf32> -> vector<9x64xf32>
    %122 = arith.addf %114, %121 : vector<9x64xf32>
    %c14 = arith.constant 14 : index
    %c0_107 = arith.constant 0 : index
    %c0_108 = arith.constant 0 : index
    %123 = vector.load %arg4[%c14, %c0_107, %c0_108] : memref<16x9x64xbf16, #tpu.memory_space<vmem>>, vector<1x9x64xbf16>
    %124 = vector.shape_cast %123 : vector<1x9x64xbf16> to vector<9x64xbf16>
    %cst_109 = arith.constant dense<0.000000e+00> : vector<9x32xf32>
    %125 = tpu.matmul %124, %9, %cst_109 {dimension_numbers = #tpu.dot_dimension_numbers<[1], [0], [0], [1], [0, 0, 1, 1], [], []>} : vector<9x64xbf16>, vector<64x32xbf16>, vector<9x32xf32> -> vector<9x32xf32>
    %126 = arith.truncf %125 : vector<9x32xf32> to vector<9x32xbf16>
    %c14_110 = arith.constant 14 : index
    %c0_111 = arith.constant 0 : index
    %c0_112 = arith.constant 0 : index
    %127 = vector.load %arg5[%c14_110, %c0_111, %c0_112] : memref<16x32x64xbf16, #tpu.memory_space<vmem>>, vector<1x32x64xbf16>
    %128 = vector.shape_cast %127 : vector<1x32x64xbf16> to vector<32x64xbf16>
    %cst_113 = arith.constant dense<0.000000e+00> : vector<9x64xf32>
    %129 = tpu.matmul %126, %128, %cst_113 {dimension_numbers = #tpu.dot_dimension_numbers<[1], [0], [0], [1], [0, 0, 1, 1], [], []>} : vector<9x32xbf16>, vector<32x64xbf16>, vector<9x64xf32> -> vector<9x64xf32>
    %130 = arith.addf %122, %129 : vector<9x64xf32>
    %c15 = arith.constant 15 : index
    %c0_114 = arith.constant 0 : index
    %c0_115 = arith.constant 0 : index
    %131 = vector.load %arg4[%c15, %c0_114, %c0_115] : memref<16x9x64xbf16, #tpu.memory_space<vmem>>, vector<1x9x64xbf16>
    %132 = vector.shape_cast %131 : vector<1x9x64xbf16> to vector<9x64xbf16>
    %cst_116 = arith.constant dense<0.000000e+00> : vector<9x32xf32>
    %133 = tpu.matmul %132, %9, %cst_116 {dimension_numbers = #tpu.dot_dimension_numbers<[1], [0], [0], [1], [0, 0, 1, 1], [], []>} : vector<9x64xbf16>, vector<64x32xbf16>, vector<9x32xf32> -> vector<9x32xf32>
    %134 = arith.truncf %133 : vector<9x32xf32> to vector<9x32xbf16>
    %c15_117 = arith.constant 15 : index
    %c0_118 = arith.constant 0 : index
    %c0_119 = arith.constant 0 : index
    %135 = vector.load %arg5[%c15_117, %c0_118, %c0_119] : memref<16x32x64xbf16, #tpu.memory_space<vmem>>, vector<1x32x64xbf16>
    %136 = vector.shape_cast %135 : vector<1x32x64xbf16> to vector<32x64xbf16>
    %cst_120 = arith.constant dense<0.000000e+00> : vector<9x64xf32>
    %137 = tpu.matmul %134, %136, %cst_120 {dimension_numbers = #tpu.dot_dimension_numbers<[1], [0], [0], [1], [0, 0, 1, 1], [], []>} : vector<9x32xbf16>, vector<32x64xbf16>, vector<9x64xf32> -> vector<9x64xf32>
    %138 = arith.addf %130, %137 : vector<9x64xf32>
    %c0_121 = arith.constant 0 : index
    %c0_122 = arith.constant 0 : index
    %139 = vector.load %arg6[%c0_121, %c0_122] : memref<1x64xf32, #tpu.memory_space<vmem>>, vector<1x64xf32>
    %140 = vector.broadcast %139 : vector<1x64xf32> to vector<9x64xf32>
    %141 = arith.addf %138, %140 : vector<9x64xf32>
    %cst_123 = arith.constant 0.000000e+00 : f32
    %142 = vector.broadcast %cst_123 : f32 to vector<9x64xf32>
    %143 = arith.maximumf %141, %142 : vector<9x64xf32>
    %144 = arith.truncf %143 : vector<9x64xf32> to vector<9x64xbf16>
    %cst_124 = arith.constant 0.000000e+00 : f32
    %145 = vector.broadcast %cst_124 : f32 to vector<1x64xf32>
    %c0_125 = arith.constant 0 : index
    %c0_126 = arith.constant 0 : index
    %c0_127 = arith.constant 0 : index
    %146 = vector.load %arg7[%c0_125, %c0_126, %c0_127] : memref<9x1x9xbf16, #tpu.memory_space<vmem>>, vector<1x1x9xbf16>
    %147 = vector.shape_cast %146 : vector<1x1x9xbf16> to vector<1x9xbf16>
    %cst_128 = arith.constant dense<0.000000e+00> : vector<1x64xf32>
    %148 = tpu.matmul %147, %144, %cst_128 {dimension_numbers = #tpu.dot_dimension_numbers<[1], [0], [0], [1], [0, 0, 1, 1], [], []>} : vector<1x9xbf16>, vector<9x64xbf16>, vector<1x64xf32> -> vector<1x64xf32>
    %149 = arith.truncf %148 : vector<1x64xf32> to vector<1x64xbf16>
    %c0_129 = arith.constant 0 : index
    %c0_130 = arith.constant 0 : index
    %c0_131 = arith.constant 0 : index
    %150 = vector.load %arg8[%c0_129, %c0_130, %c0_131] : memref<9x64x64xbf16, #tpu.memory_space<vmem>>, vector<1x64x64xbf16>
    %151 = vector.shape_cast %150 : vector<1x64x64xbf16> to vector<64x64xbf16>
    %cst_132 = arith.constant dense<0.000000e+00> : vector<1x64xf32>
    %152 = tpu.matmul %149, %151, %cst_132 {dimension_numbers = #tpu.dot_dimension_numbers<[1], [0], [0], [1], [0, 0, 1, 1], [], []>} : vector<1x64xbf16>, vector<64x64xbf16>, vector<1x64xf32> -> vector<1x64xf32>
    %153 = arith.addf %145, %152 : vector<1x64xf32>
    %c1_133 = arith.constant 1 : index
    %c0_134 = arith.constant 0 : index
    %c0_135 = arith.constant 0 : index
    %154 = vector.load %arg7[%c1_133, %c0_134, %c0_135] : memref<9x1x9xbf16, #tpu.memory_space<vmem>>, vector<1x1x9xbf16>
    %155 = vector.shape_cast %154 : vector<1x1x9xbf16> to vector<1x9xbf16>
    %cst_136 = arith.constant dense<0.000000e+00> : vector<1x64xf32>
    %156 = tpu.matmul %155, %144, %cst_136 {dimension_numbers = #tpu.dot_dimension_numbers<[1], [0], [0], [1], [0, 0, 1, 1], [], []>} : vector<1x9xbf16>, vector<9x64xbf16>, vector<1x64xf32> -> vector<1x64xf32>
    %157 = arith.truncf %156 : vector<1x64xf32> to vector<1x64xbf16>
    %c1_137 = arith.constant 1 : index
    %c0_138 = arith.constant 0 : index
    %c0_139 = arith.constant 0 : index
    %158 = vector.load %arg8[%c1_137, %c0_138, %c0_139] : memref<9x64x64xbf16, #tpu.memory_space<vmem>>, vector<1x64x64xbf16>
    %159 = vector.shape_cast %158 : vector<1x64x64xbf16> to vector<64x64xbf16>
    %cst_140 = arith.constant dense<0.000000e+00> : vector<1x64xf32>
    %160 = tpu.matmul %157, %159, %cst_140 {dimension_numbers = #tpu.dot_dimension_numbers<[1], [0], [0], [1], [0, 0, 1, 1], [], []>} : vector<1x64xbf16>, vector<64x64xbf16>, vector<1x64xf32> -> vector<1x64xf32>
    %161 = arith.addf %153, %160 : vector<1x64xf32>
    %c2_141 = arith.constant 2 : index
    %c0_142 = arith.constant 0 : index
    %c0_143 = arith.constant 0 : index
    %162 = vector.load %arg7[%c2_141, %c0_142, %c0_143] : memref<9x1x9xbf16, #tpu.memory_space<vmem>>, vector<1x1x9xbf16>
    %163 = vector.shape_cast %162 : vector<1x1x9xbf16> to vector<1x9xbf16>
    %cst_144 = arith.constant dense<0.000000e+00> : vector<1x64xf32>
    %164 = tpu.matmul %163, %144, %cst_144 {dimension_numbers = #tpu.dot_dimension_numbers<[1], [0], [0], [1], [0, 0, 1, 1], [], []>} : vector<1x9xbf16>, vector<9x64xbf16>, vector<1x64xf32> -> vector<1x64xf32>
    %165 = arith.truncf %164 : vector<1x64xf32> to vector<1x64xbf16>
    %c2_145 = arith.constant 2 : index
    %c0_146 = arith.constant 0 : index
    %c0_147 = arith.constant 0 : index
    %166 = vector.load %arg8[%c2_145, %c0_146, %c0_147] : memref<9x64x64xbf16, #tpu.memory_space<vmem>>, vector<1x64x64xbf16>
    %167 = vector.shape_cast %166 : vector<1x64x64xbf16> to vector<64x64xbf16>
    %cst_148 = arith.constant dense<0.000000e+00> : vector<1x64xf32>
    %168 = tpu.matmul %165, %167, %cst_148 {dimension_numbers = #tpu.dot_dimension_numbers<[1], [0], [0], [1], [0, 0, 1, 1], [], []>} : vector<1x64xbf16>, vector<64x64xbf16>, vector<1x64xf32> -> vector<1x64xf32>
    %169 = arith.addf %161, %168 : vector<1x64xf32>
    %c3_149 = arith.constant 3 : index
    %c0_150 = arith.constant 0 : index
    %c0_151 = arith.constant 0 : index
    %170 = vector.load %arg7[%c3_149, %c0_150, %c0_151] : memref<9x1x9xbf16, #tpu.memory_space<vmem>>, vector<1x1x9xbf16>
    %171 = vector.shape_cast %170 : vector<1x1x9xbf16> to vector<1x9xbf16>
    %cst_152 = arith.constant dense<0.000000e+00> : vector<1x64xf32>
    %172 = tpu.matmul %171, %144, %cst_152 {dimension_numbers = #tpu.dot_dimension_numbers<[1], [0], [0], [1], [0, 0, 1, 1], [], []>} : vector<1x9xbf16>, vector<9x64xbf16>, vector<1x64xf32> -> vector<1x64xf32>
    %173 = arith.truncf %172 : vector<1x64xf32> to vector<1x64xbf16>
    %c3_153 = arith.constant 3 : index
    %c0_154 = arith.constant 0 : index
    %c0_155 = arith.constant 0 : index
    %174 = vector.load %arg8[%c3_153, %c0_154, %c0_155] : memref<9x64x64xbf16, #tpu.memory_space<vmem>>, vector<1x64x64xbf16>
    %175 = vector.shape_cast %174 : vector<1x64x64xbf16> to vector<64x64xbf16>
    %cst_156 = arith.constant dense<0.000000e+00> : vector<1x64xf32>
    %176 = tpu.matmul %173, %175, %cst_156 {dimension_numbers = #tpu.dot_dimension_numbers<[1], [0], [0], [1], [0, 0, 1, 1], [], []>} : vector<1x64xbf16>, vector<64x64xbf16>, vector<1x64xf32> -> vector<1x64xf32>
    %177 = arith.addf %169, %176 : vector<1x64xf32>
    %c4_157 = arith.constant 4 : index
    %c0_158 = arith.constant 0 : index
    %c0_159 = arith.constant 0 : index
    %178 = vector.load %arg7[%c4_157, %c0_158, %c0_159] : memref<9x1x9xbf16, #tpu.memory_space<vmem>>, vector<1x1x9xbf16>
    %179 = vector.shape_cast %178 : vector<1x1x9xbf16> to vector<1x9xbf16>
    %cst_160 = arith.constant dense<0.000000e+00> : vector<1x64xf32>
    %180 = tpu.matmul %179, %144, %cst_160 {dimension_numbers = #tpu.dot_dimension_numbers<[1], [0], [0], [1], [0, 0, 1, 1], [], []>} : vector<1x9xbf16>, vector<9x64xbf16>, vector<1x64xf32> -> vector<1x64xf32>
    %181 = arith.truncf %180 : vector<1x64xf32> to vector<1x64xbf16>
    %c4_161 = arith.constant 4 : index
    %c0_162 = arith.constant 0 : index
    %c0_163 = arith.constant 0 : index
    %182 = vector.load %arg8[%c4_161, %c0_162, %c0_163] : memref<9x64x64xbf16, #tpu.memory_space<vmem>>, vector<1x64x64xbf16>
    %183 = vector.shape_cast %182 : vector<1x64x64xbf16> to vector<64x64xbf16>
    %cst_164 = arith.constant dense<0.000000e+00> : vector<1x64xf32>
    %184 = tpu.matmul %181, %183, %cst_164 {dimension_numbers = #tpu.dot_dimension_numbers<[1], [0], [0], [1], [0, 0, 1, 1], [], []>} : vector<1x64xbf16>, vector<64x64xbf16>, vector<1x64xf32> -> vector<1x64xf32>
    %185 = arith.addf %177, %184 : vector<1x64xf32>
    %c5_165 = arith.constant 5 : index
    %c0_166 = arith.constant 0 : index
    %c0_167 = arith.constant 0 : index
    %186 = vector.load %arg7[%c5_165, %c0_166, %c0_167] : memref<9x1x9xbf16, #tpu.memory_space<vmem>>, vector<1x1x9xbf16>
    %187 = vector.shape_cast %186 : vector<1x1x9xbf16> to vector<1x9xbf16>
    %cst_168 = arith.constant dense<0.000000e+00> : vector<1x64xf32>
    %188 = tpu.matmul %187, %144, %cst_168 {dimension_numbers = #tpu.dot_dimension_numbers<[1], [0], [0], [1], [0, 0, 1, 1], [], []>} : vector<1x9xbf16>, vector<9x64xbf16>, vector<1x64xf32> -> vector<1x64xf32>
    %189 = arith.truncf %188 : vector<1x64xf32> to vector<1x64xbf16>
    %c5_169 = arith.constant 5 : index
    %c0_170 = arith.constant 0 : index
    %c0_171 = arith.constant 0 : index
    %190 = vector.load %arg8[%c5_169, %c0_170, %c0_171] : memref<9x64x64xbf16, #tpu.memory_space<vmem>>, vector<1x64x64xbf16>
    %191 = vector.shape_cast %190 : vector<1x64x64xbf16> to vector<64x64xbf16>
    %cst_172 = arith.constant dense<0.000000e+00> : vector<1x64xf32>
    %192 = tpu.matmul %189, %191, %cst_172 {dimension_numbers = #tpu.dot_dimension_numbers<[1], [0], [0], [1], [0, 0, 1, 1], [], []>} : vector<1x64xbf16>, vector<64x64xbf16>, vector<1x64xf32> -> vector<1x64xf32>
    %193 = arith.addf %185, %192 : vector<1x64xf32>
    %c6_173 = arith.constant 6 : index
    %c0_174 = arith.constant 0 : index
    %c0_175 = arith.constant 0 : index
    %194 = vector.load %arg7[%c6_173, %c0_174, %c0_175] : memref<9x1x9xbf16, #tpu.memory_space<vmem>>, vector<1x1x9xbf16>
    %195 = vector.shape_cast %194 : vector<1x1x9xbf16> to vector<1x9xbf16>
    %cst_176 = arith.constant dense<0.000000e+00> : vector<1x64xf32>
    %196 = tpu.matmul %195, %144, %cst_176 {dimension_numbers = #tpu.dot_dimension_numbers<[1], [0], [0], [1], [0, 0, 1, 1], [], []>} : vector<1x9xbf16>, vector<9x64xbf16>, vector<1x64xf32> -> vector<1x64xf32>
    %197 = arith.truncf %196 : vector<1x64xf32> to vector<1x64xbf16>
    %c6_177 = arith.constant 6 : index
    %c0_178 = arith.constant 0 : index
    %c0_179 = arith.constant 0 : index
    %198 = vector.load %arg8[%c6_177, %c0_178, %c0_179] : memref<9x64x64xbf16, #tpu.memory_space<vmem>>, vector<1x64x64xbf16>
    %199 = vector.shape_cast %198 : vector<1x64x64xbf16> to vector<64x64xbf16>
    %cst_180 = arith.constant dense<0.000000e+00> : vector<1x64xf32>
    %200 = tpu.matmul %197, %199, %cst_180 {dimension_numbers = #tpu.dot_dimension_numbers<[1], [0], [0], [1], [0, 0, 1, 1], [], []>} : vector<1x64xbf16>, vector<64x64xbf16>, vector<1x64xf32> -> vector<1x64xf32>
    %201 = arith.addf %193, %200 : vector<1x64xf32>
    %c7_181 = arith.constant 7 : index
    %c0_182 = arith.constant 0 : index
    %c0_183 = arith.constant 0 : index
    %202 = vector.load %arg7[%c7_181, %c0_182, %c0_183] : memref<9x1x9xbf16, #tpu.memory_space<vmem>>, vector<1x1x9xbf16>
    %203 = vector.shape_cast %202 : vector<1x1x9xbf16> to vector<1x9xbf16>
    %cst_184 = arith.constant dense<0.000000e+00> : vector<1x64xf32>
    %204 = tpu.matmul %203, %144, %cst_184 {dimension_numbers = #tpu.dot_dimension_numbers<[1], [0], [0], [1], [0, 0, 1, 1], [], []>} : vector<1x9xbf16>, vector<9x64xbf16>, vector<1x64xf32> -> vector<1x64xf32>
    %205 = arith.truncf %204 : vector<1x64xf32> to vector<1x64xbf16>
    %c7_185 = arith.constant 7 : index
    %c0_186 = arith.constant 0 : index
    %c0_187 = arith.constant 0 : index
    %206 = vector.load %arg8[%c7_185, %c0_186, %c0_187] : memref<9x64x64xbf16, #tpu.memory_space<vmem>>, vector<1x64x64xbf16>
    %207 = vector.shape_cast %206 : vector<1x64x64xbf16> to vector<64x64xbf16>
    %cst_188 = arith.constant dense<0.000000e+00> : vector<1x64xf32>
    %208 = tpu.matmul %205, %207, %cst_188 {dimension_numbers = #tpu.dot_dimension_numbers<[1], [0], [0], [1], [0, 0, 1, 1], [], []>} : vector<1x64xbf16>, vector<64x64xbf16>, vector<1x64xf32> -> vector<1x64xf32>
    %209 = arith.addf %201, %208 : vector<1x64xf32>
    %c8_189 = arith.constant 8 : index
    %c0_190 = arith.constant 0 : index
    %c0_191 = arith.constant 0 : index
    %210 = vector.load %arg7[%c8_189, %c0_190, %c0_191] : memref<9x1x9xbf16, #tpu.memory_space<vmem>>, vector<1x1x9xbf16>
    %211 = vector.shape_cast %210 : vector<1x1x9xbf16> to vector<1x9xbf16>
    %cst_192 = arith.constant dense<0.000000e+00> : vector<1x64xf32>
    %212 = tpu.matmul %211, %144, %cst_192 {dimension_numbers = #tpu.dot_dimension_numbers<[1], [0], [0], [1], [0, 0, 1, 1], [], []>} : vector<1x9xbf16>, vector<9x64xbf16>, vector<1x64xf32> -> vector<1x64xf32>
    %213 = arith.truncf %212 : vector<1x64xf32> to vector<1x64xbf16>
    %c8_193 = arith.constant 8 : index
    %c0_194 = arith.constant 0 : index
    %c0_195 = arith.constant 0 : index
    %214 = vector.load %arg8[%c8_193, %c0_194, %c0_195] : memref<9x64x64xbf16, #tpu.memory_space<vmem>>, vector<1x64x64xbf16>
    %215 = vector.shape_cast %214 : vector<1x64x64xbf16> to vector<64x64xbf16>
    %cst_196 = arith.constant dense<0.000000e+00> : vector<1x64xf32>
    %216 = tpu.matmul %213, %215, %cst_196 {dimension_numbers = #tpu.dot_dimension_numbers<[1], [0], [0], [1], [0, 0, 1, 1], [], []>} : vector<1x64xbf16>, vector<64x64xbf16>, vector<1x64xf32> -> vector<1x64xf32>
    %217 = arith.addf %209, %216 : vector<1x64xf32>
    %c0_197 = arith.constant 0 : index
    %c0_198 = arith.constant 0 : index
    %218 = vector.load %arg9[%c0_197, %c0_198] : memref<1x64xf32, #tpu.memory_space<vmem>>, vector<1x64xf32>
    %219 = arith.addf %217, %218 : vector<1x64xf32>
    %cst_199 = arith.constant 0.000000e+00 : f32
    %220 = vector.broadcast %cst_199 : f32 to vector<1x64xf32>
    %221 = arith.maximumf %219, %220 : vector<1x64xf32>
    %222 = arith.truncf %221 : vector<1x64xf32> to vector<1x64xbf16>
    %cst_200 = arith.constant 0.000000e+00 : f32
    %223 = vector.broadcast %cst_200 : f32 to vector<1x512xf32>
    %c0_201 = arith.constant 0 : index
    %c0_202 = arith.constant 0 : index
    %c0_203 = arith.constant 0 : index
    %224 = vector.load %arg10[%c0_201, %c0_202, %c0_203] : memref<1x64x512xbf16, #tpu.memory_space<vmem>>, vector<1x64x512xbf16>
    %225 = vector.shape_cast %224 : vector<1x64x512xbf16> to vector<64x512xbf16>
    %cst_204 = arith.constant dense<0.000000e+00> : vector<1x512xf32>
    %226 = tpu.matmul %222, %225, %cst_204 {dimension_numbers = #tpu.dot_dimension_numbers<[1], [0], [0], [1], [0, 0, 1, 1], [], []>} : vector<1x64xbf16>, vector<64x512xbf16>, vector<1x512xf32> -> vector<1x512xf32>
    %227 = arith.addf %223, %226 : vector<1x512xf32>
    %c0_205 = arith.constant 0 : index
    %c0_206 = arith.constant 0 : index
    %228 = vector.load %arg11[%c0_205, %c0_206] : memref<1x512xf32, #tpu.memory_space<vmem>>, vector<1x512xf32>
    %229 = arith.addf %227, %228 : vector<1x512xf32>
    %cst_207 = arith.constant 0.000000e+00 : f32
    %230 = vector.broadcast %cst_207 : f32 to vector<1x512xf32>
    %231 = arith.maximumf %229, %230 : vector<1x512xf32>
    %c0_208 = arith.constant 0 : index
    %c0_209 = arith.constant 0 : index
    %c0_210 = arith.constant 0 : index
    %232 = vector.load %arg12[%c0_208, %c0_209, %c0_210] : memref<1x1x512xf32, #tpu.memory_space<vmem>>, vector<1x1x512xf32>
    %233 = vector.shape_cast %232 : vector<1x1x512xf32> to vector<1x512xf32>
    %234 = vector.shape_cast %231 : vector<1x512xf32> to vector<1x1x512xf32>
    tpu.vector_store %arg12[%c0_208, %c0_209, %c0_210], %234 {strides = array<i32>} : memref<1x1x512xf32, #tpu.memory_space<vmem>>, vector<1x1x512xf32>,
    return
  }
  func.func @transform_0(%arg0: i32) -> (i32, i32, i32) {
    %c0_i32 = arith.constant 0 : i32
    %c0_i32_0 = arith.constant 0 : i32
    %c0_i32_1 = arith.constant 0 : i32
    return %arg0, %c0_i32, %c0_i32_0 : i32, i32, i32
  }
  func.func @transform_1(%arg0: i32) -> (i32, i32) {
    %c0_i32 = arith.constant 0 : i32
    %c0_i32_0 = arith.constant 0 : i32
    %c0_i32_1 = arith.constant 0 : i32
    return %c0_i32, %c0_i32_0 : i32, i32
  }
  func.func @transform_2(%arg0: i32) -> (i32, i32) {
    %c0_i32 = arith.constant 0 : i32
    %c0_i32_0 = arith.constant 0 : i32
    %c0_i32_1 = arith.constant 0 : i32
    return %c0_i32, %c0_i32_0 : i32, i32
  }
  func.func @transform_3(%arg0: i32) -> (i32, i32, i32) {
    %c0_i32 = arith.constant 0 : i32
    %c0_i32_0 = arith.constant 0 : i32
    %c0_i32_1 = arith.constant 0 : i32
    %c0_i32_2 = arith.constant 0 : i32
    return %c0_i32, %c0_i32_0, %c0_i32_1 : i32, i32, i32
  }
  func.func @transform_4(%arg0: i32) -> (i32, i32, i32) {
    %c0_i32 = arith.constant 0 : i32
    %c0_i32_0 = arith.constant 0 : i32
    %c0_i32_1 = arith.constant 0 : i32
    %c0_i32_2 = arith.constant 0 : i32
    return %c0_i32, %c0_i32_0, %c0_i32_1 : i32, i32, i32
  }
  func.func @transform_5(%arg0: i32) -> (i32, i32) {
    %c0_i32 = arith.constant 0 : i32
    %c0_i32_0 = arith.constant 0 : i32
    %c0_i32_1 = arith.constant 0 : i32
    return %c0_i32, %c0_i32_0 : i32, i32
  }
  func.func @transform_6(%arg0: i32) -> (i32, i32, i32) {
    %c0_i32 = arith.constant 0 : i32
    %c0_i32_0 = arith.constant 0 : i32
    %c0_i32_1 = arith.constant 0 : i32
    %c0_i32_2 = arith.constant 0 : i32
    return %c0_i32, %c0_i32_0, %c0_i32_1 : i32, i32, i32
  }
  func.func @transform_7(%arg0: i32) -> (i32, i32, i32) {
    %c0_i32 = arith.constant 0 : i32
    %c0_i32_0 = arith.constant 0 : i32
    %c0_i32_1 = arith.constant 0 : i32
    %c0_i32_2 = arith.constant 0 : i32
    return %c0_i32, %c0_i32_0, %c0_i32_1 : i32, i32, i32
  }
  func.func @transform_8(%arg0: i32) -> (i32, i32) {
    %c0_i32 = arith.constant 0 : i32
    %c0_i32_0 = arith.constant 0 : i32
    %c0_i32_1 = arith.constant 0 : i32
    return %c0_i32, %c0_i32_0 : i32, i32
  }
  func.func @transform_9(%arg0: i32) -> (i32, i32, i32) {
    %c0_i32 = arith.constant 0 : i32
    %c0_i32_0 = arith.constant 0 : i32
    %c0_i32_1 = arith.constant 0 : i32
    %c0_i32_2 = arith.constant 0 : i32
    return %c0_i32, %c0_i32_0, %c0_i32_1 : i32, i32, i32
  }
  func.func @transform_10(%arg0: i32) -> (i32, i32) {
    %c0_i32 = arith.constant 0 : i32
    %c0_i32_0 = arith.constant 0 : i32
    %c0_i32_1 = arith.constant 0 : i32
    return %c0_i32, %c0_i32_0 : i32, i32
  }
  func.func @transform_11(%arg0: i32) -> (i32, i32, i32) {
    %c0_i32 = arith.constant 0 : i32
    %c0_i32_0 = arith.constant 0 : i32
    %c0_i32_1 = arith.constant 0 : i32
    return %arg0, %c0_i32, %c0_i32_0 : i32, i32, i32
  }
}

</mosaic_0001>

<llo_original>
// kernel: nature_cnn_forward.1
$region0: #{nature_cnn_forward.1}
  #allocation0 [shape = 'u32[]', space=smem, size = 0x4, offset = 0x4, fixed_abs, tag = 'smem constant byte address 0x4 - core index']
  #allocation1 [shape = 'u32[72,128]{1,0:T(1,128)}', space=vmem, size = 0x9000, scoped, tag = 'internal scratch']
  %s0 = inlined_call_operand.vmem [shape: bf16[2,64,256], index: 0, kind: input, shape index: {}]
  %s1 = inlined_call_operand.vmem [shape: bf16[256,32], index: 1, kind: input, shape index: {}]
  %s2 = inlined_call_operand.vmem [shape: f32[1,32], index: 2, kind: input, shape index: {}]
  %s3 = inlined_call_operand.vmem [shape: bf16[16,9,64], index: 3, kind: input, shape index: {}]
  %s4 = inlined_call_operand.vmem [shape: bf16[16,32,64], index: 4, kind: input, shape index: {}]
  %s5 = inlined_call_operand.vmem [shape: f32[1,64], index: 5, kind: input, shape index: {}]
  %s6 = inlined_call_operand.vmem [shape: bf16[9,1,9], index: 6, kind: input, shape index: {}]
  %s7 = inlined_call_operand.vmem [shape: bf16[9,64,64], index: 7, kind: input, shape index: {}]
  %s8 = inlined_call_operand.vmem [shape: f32[1,64], index: 8, kind: input, shape index: {}]
  %s9 = inlined_call_operand.vmem [shape: bf16[1,64,512], index: 9, kind: input, shape index: {}]
  %s10 = inlined_call_operand.vmem [shape: f32[1,512], index: 10, kind: input, shape index: {}]
  %s11 = inlined_call_operand.vmem [shape: f32[2,1,512], index: 11, kind: output, shape index: {}]
  %s12 = sld [smem:[#allocation0]]
  $region77: #{nature_cnn_forward.1} parent=0
    _
  %s14 = ssub.s32 1, %s12
  %s15 = scalar_select 0, %s14, %s12
  loop: start=0, step=1, limit=4
  $region2: #{nature_cnn_forward.1} parent=0 // loop_pre_header
    _
  $region3: #{nature_cnn_forward.1} parent=0 // loop_header
    %s17 = sphi 0, %s21
    %p18 = scmp.ge.s32.totalorder %s17, 4
    %s27 = sphi 0, %s29
    %s30 = sphi 0, %s27
    %s31 = sphi 0, %s30
    %s47 = sphi 0, %s31
    %s51 = sphi 0, %s51
    %s53 = sphi 0, %s51
    %s54 = sphi 0, %s53
    %s68 = sphi 0, %s54
    %s72 = sphi 0, %s72
    %s74 = sphi 0, %s72
    %s75 = sphi 0, %s74
    %s89 = sphi 0, %s75
    %s93 = sphi 0, %s93
    %s95 = sphi 0, %s93
    %s96 = sphi 0, %s95
    %s110 = sphi 0, %s96
    %s114 = sphi 0, %s114
    %s116 = sphi 0, %s114
    %s117 = sphi 0, %s116
    %s131 = sphi 0, %s117
    %s135 = sphi 0, %s135
    %s137 = sphi 0, %s135
    %s138 = sphi 0, %s137
    %s152 = sphi 0, %s138
    %s156 = sphi 0, %s156
    %s158 = sphi 0, %s156
    %s159 = sphi 0, %s158
    %s173 = sphi 0, %s159
    %s177 = sphi 0, %s177
    %s179 = sphi 0, %s177
    %s180 = sphi 0, %s179
    %s194 = sphi 0, %s180
    %s198 = sphi 0, %s198
    %s200 = sphi 0, %s198
    %s201 = sphi 0, %s200
    %s215 = sphi 0, %s201
    %s219 = sphi 0, %s219
    %s221 = sphi 0, %s219
    %s222 = sphi 0, %s221
    %s236 = sphi 0, %s222
    %s240 = sphi 0, %s240
    %s242 = sphi 0, %s240
    %s243 = sphi 0, %s242
    %s257 = sphi 0, %s243
    %s263 = sphi 0, %s265
    %s266 = sphi 0, %s263
    %s267 = sphi 0, %s266
    %s283 = sphi 0, %s267
  $region4: #{nature_cnn_forward.1} parent=0 // loop_header_branch
    %20 = sbr.rel (%p18) target = $region8
  $region5: #{nature_cnn_forward.1} parent=0 // loop_body
    %s22 = ssub.s32 %s17, 1
    %s23 = ssub.s32 %s17, 2
    %s24 = sadd.s32 %s17, 1
    %s25 = ssub.s32 %s17, %s24
    %p26 = scmp.eq.s32.totalorder %s25, 0
    %s28 = sadd.s32 %s27, 1
    %s29 = scalar_select %p26, %s27, %s28
    %p32 = pneg %p26
    %p33 = scmp.eq.s32.totalorder %s17, 1
    %p34 = por %p32, %p33
    %p35 = scmp.ne.s32.totalorder %s27, %s30
    %p36 = scmp.eq.s32.totalorder %s17, 0
    %p37 = por %p35, %p36
    %p38 = scmp.ne.s32.totalorder %s27, %s30
    %p39 = scmp.eq.s32.totalorder %s22, 1
    %p40 = por %p38, %p39
    %p41 = scmp.ne.s32.totalorder %s30, %s31
    %p42 = scmp.eq.s32.totalorder %s22, 0
    %p43 = por %p41, %p42
    %p44 = scmp.ne.s32.totalorder %s30, %s31
    %p45 = scmp.eq.s32.totalorder %s23, 1
    %p46 = por %p44, %p45
    %p48 = scmp.ne.s32.totalorder %s31, %s47
    %p49 = scmp.eq.s32.totalorder %s23, 0
    %p50 = por %p48, %p49
    %s52 = sadd.s32 %s51, 1
    %p55 = scmp.eq.s32.totalorder %s17, 1
    %p56 = scmp.ne.s32.totalorder %s51, %s53
    %p57 = scmp.eq.s32.totalorder %s17, 0
    %p58 = por %p56, %p57
    %p59 = scmp.ne.s32.totalorder %s51, %s53
    %p60 = scmp.eq.s32.totalorder %s22, 1
    %p61 = por %p59, %p60
    %p62 = scmp.ne.s32.totalorder %s53, %s54
    %p63 = scmp.eq.s32.totalorder %s22, 0
    %p64 = por %p62, %p63
    %p65 = scmp.ne.s32.totalorder %s53, %s54
    %p66 = scmp.eq.s32.totalorder %s23, 1
    %p67 = por %p65, %p66
    %p69 = scmp.ne.s32.totalorder %s54, %s68
    %p70 = scmp.eq.s32.totalorder %s23, 0
    %p71 = por %p69, %p70
    %s73 = sadd.s32 %s72, 1
    %p76 = scmp.eq.s32.totalorder %s17, 1
    %p77 = scmp.ne.s32.totalorder %s72, %s74
    %p78 = scmp.eq.s32.totalorder %s17, 0
    %p79 = por %p77, %p78
    %p80 = scmp.ne.s32.totalorder %s72, %s74
    %p81 = scmp.eq.s32.totalorder %s22, 1
    %p82 = por %p80, %p81
    %p83 = scmp.ne.s32.totalorder %s74, %s75
    %p84 = scmp.eq.s32.totalorder %s22, 0
    %p85 = por %p83, %p84
    %p86 = scmp.ne.s32.totalorder %s74, %s75
    %p87 = scmp.eq.s32.totalorder %s23, 1
    %p88 = por %p86, %p87
    %p90 = scmp.ne.s32.totalorder %s75, %s89
    %p91 = scmp.eq.s32.totalorder %s23, 0
    %p92 = por %p90, %p91
    %s94 = sadd.s32 %s93, 1
    %p97 = scmp.eq.s32.totalorder %s17, 1
    %p98 = scmp.ne.s32.totalorder %s93, %s95
    %p99 = scmp.eq.s32.totalorder %s17, 0
    %p100 = por %p98, %p99
    %p101 = scmp.ne.s32.totalorder %s93, %s95
    %p102 = scmp.eq.s32.totalorder %s22, 1
    %p103 = por %p101, %p102
    %p104 = scmp.ne.s32.totalorder %s95, %s96
    %p105 = scmp.eq.s32.totalorder %s22, 0
    %p106 = por %p104, %p105
    %p107 = scmp.ne.s32.totalorder %s95, %s96
    %p108 = scmp.eq.s32.totalorder %s23, 1
    %p109 = por %p107, %p108
    %p111 = scmp.ne.s32.totalorder %s96, %s110
    %p112 = scmp.eq.s32.totalorder %s23, 0
    %p113 = por %p111, %p112
    %s115 = sadd.s32 %s114, 1
    %p118 = scmp.eq.s32.totalorder %s17, 1
    %p119 = scmp.ne.s32.totalorder %s114, %s116
    %p120 = scmp.eq.s32.totalorder %s17, 0
    %p121 = por %p119, %p120
    %p122 = scmp.ne.s32.totalorder %s114, %s116
    %p123 = scmp.eq.s32.totalorder %s22, 1
    %p124 = por %p122, %p123
    %p125 = scmp.ne.s32.totalorder %s116, %s117
    %p126 = scmp.eq.s32.totalorder %s22, 0
    %p127 = por %p125, %p126
    %p128 = scmp.ne.s32.totalorder %s116, %s117
    %p129 = scmp.eq.s32.totalorder %s23, 1
    %p130 = por %p128, %p129
    %p132 = scmp.ne.s32.totalorder %s117, %s131
    %p133 = scmp.eq.s32.totalorder %s23, 0
    %p134 = por %p132, %p133
    %s136 = sadd.s32 %s135, 1
    %p139 = scmp.eq.s32.totalorder %s17, 1
    %p140 = scmp.ne.s32.totalorder %s135, %s137
    %p141 = scmp.eq.s32.totalorder %s17, 0
    %p142 = por %p140, %p141
    %p143 = scmp.ne.s32.totalorder %s135, %s137
    %p144 = scmp.eq.s32.totalorder %s22, 1
    %p145 = por %p143, %p144
    %p146 = scmp.ne.s32.totalorder %s137, %s138
    %p147 = scmp.eq.s32.totalorder %s22, 0
    %p148 = por %p146, %p147
    %p149 = scmp.ne.s32.totalorder %s137, %s138
    %p150 = scmp.eq.s32.totalorder %s23, 1
    %p151 = por %p149, %p150
    %p153 = scmp.ne.s32.totalorder %s138, %s152
    %p154 = scmp.eq.s32.totalorder %s23, 0
    %p155 = por %p153, %p154
    %s157 = sadd.s32 %s156, 1
    %p160 = scmp.eq.s32.totalorder %s17, 1
    %p161 = scmp.ne.s32.totalorder %s156, %s158
    %p162 = scmp.eq.s32.totalorder %s17, 0
    %p163 = por %p161, %p162
    %p164 = scmp.ne.s32.totalorder %s156, %s158
    %p165 = scmp.eq.s32.totalorder %s22, 1
    %p166 = por %p164, %p165
    %p167 = scmp.ne.s32.totalorder %s158, %s159
    %p168 = scmp.eq.s32.totalorder %s22, 0
    %p169 = por %p167, %p168
    %p170 = scmp.ne.s32.totalorder %s158, %s159
    %p171 = scmp.eq.s32.totalorder %s23, 1
    %p172 = por %p170, %p171
    %p174 = scmp.ne.s32.totalorder %s159, %s173
    %p175 = scmp.eq.s32.totalorder %s23, 0
    %p176 = por %p174, %p175
    %s178 = sadd.s32 %s177, 1
    %p181 = scmp.eq.s32.totalorder %s17, 1
    %p182 = scmp.ne.s32.totalorder %s177, %s179
    %p183 = scmp.eq.s32.totalorder %s17, 0
    %p184 = por %p182, %p183
    %p185 = scmp.ne.s32.totalorder %s177, %s179
    %p186 = scmp.eq.s32.totalorder %s22, 1
    %p187 = por %p185, %p186
    %p188 = scmp.ne.s32.totalorder %s179, %s180
    %p189 = scmp.eq.s32.totalorder %s22, 0
    %p190 = por %p188, %p189
    %p191 = scmp.ne.s32.totalorder %s179, %s180
    %p192 = scmp.eq.s32.totalorder %s23, 1
    %p193 = por %p191, %p192
    %p195 = scmp.ne.s32.totalorder %s180, %s194
    %p196 = scmp.eq.s32.totalorder %s23, 0
    %p197 = por %p195, %p196
    %s199 = sadd.s32 %s198, 1
    %p202 = scmp.eq.s32.totalorder %s17, 1
    %p203 = scmp.ne.s32.totalorder %s198, %s200
    %p204 = scmp.eq.s32.totalorder %s17, 0
    %p205 = por %p203, %p204
    %p206 = scmp.ne.s32.totalorder %s198, %s200
    %p207 = scmp.eq.s32.totalorder %s22, 1
    %p208 = por %p206, %p207
    %p209 = scmp.ne.s32.totalorder %s200, %s201
    %p210 = scmp.eq.s32.totalorder %s22, 0
    %p211 = por %p209, %p210
    %p212 = scmp.ne.s32.totalorder %s200, %s201
    %p213 = scmp.eq.s32.totalorder %s23, 1
    %p214 = por %p212, %p213
    %p216 = scmp.ne.s32.totalorder %s201, %s215
    %p217 = scmp.eq.s32.totalorder %s23, 0
    %p218 = por %p216, %p217
    %s220 = sadd.s32 %s219, 1
    %p223 = scmp.eq.s32.totalorder %s17, 1
    %p224 = scmp.ne.s32.totalorder %s219, %s221
    %p225 = scmp.eq.s32.totalorder %s17, 0
    %p226 = por %p224, %p225
    %p227 = scmp.ne.s32.totalorder %s219, %s221
    %p228 = scmp.eq.s32.totalorder %s22, 1
    %p229 = por %p227, %p228
    %p230 = scmp.ne.s32.totalorder %s221, %s222
    %p231 = scmp.eq.s32.totalorder %s22, 0
    %p232 = por %p230, %p231
    %p233 = scmp.ne.s32.totalorder %s221, %s222
    %p234 = scmp.eq.s32.totalorder %s23, 1
    %p235 = por %p233, %p234
    %p237 = scmp.ne.s32.totalorder %s222, %s236
    %p238 = scmp.eq.s32.totalorder %s23, 0
    %p239 = por %p237, %p238
    %s241 = sadd.s32 %s240, 1
    %p244 = scmp.eq.s32.totalorder %s17, 1
    %p245 = scmp.ne.s32.totalorder %s240, %s242
    %p246 = scmp.eq.s32.totalorder %s17, 0
    %p247 = por %p245, %p246
    %p248 = scmp.ne.s32.totalorder %s240, %s242
    %p249 = scmp.eq.s32.totalorder %s22, 1
    %p250 = por %p248, %p249
    %p251 = scmp.ne.s32.totalorder %s242, %s243
    %p252 = scmp.eq.s32.totalorder %s22, 0
    %p253 = por %p251, %p252
    %p254 = scmp.ne.s32.totalorder %s242, %s243
    %p255 = scmp.eq.s32.totalorder %s23, 1
    %p256 = por %p254, %p255
    %p258 = scmp.ne.s32.totalorder %s243, %s257
    %p259 = scmp.eq.s32.totalorder %s23, 0
    %p260 = por %p258, %p259
    %s261 = ssub.s32 %s17, %s24
    %p262 = scmp.eq.s32.totalorder %s261, 0
    %s264 = sadd.s32 %s263, 1
    %s265 = scalar_select %p262, %s263, %s264
    %p268 = pneg %p262
    %p269 = scmp.eq.s32.totalorder %s17, 1
    %p270 = por %p268, %p269
    %p271 = scmp.ne.s32.totalorder %s263, %s266
    %p272 = scmp.eq.s32.totalorder %s17, 0
    %p273 = por %p271, %p272
    %p274 = scmp.ne.s32.totalorder %s263, %s266
    %p275 = scmp.eq.s32.totalorder %s22, 1
    %p276 = por %p274, %p275
    %p277 = scmp.ne.s32.totalorder %s266, %s267
    %p278 = scmp.eq.s32.totalorder %s22, 0
    %p279 = por %p277, %p278
    %p280 = scmp.ne.s32.totalorder %s266, %s267
    %p281 = scmp.eq.s32.totalorder %s23, 1
    %p282 = por %p280, %p281
    %p284 = scmp.ne.s32.totalorder %s267, %s283
    %p285 = scmp.eq.s32.totalorder %s23, 0
    %p286 = por %p284, %p285
    %p287 = scmp.le.s32.totalorder 1, %s17
    %p288 = scmp.lt.s32.totalorder %s17, 3
    %p289 = pnand %p287, %p288
    %p290 = pneg %p289
    // Predicated region
    $region9: #{nature_cnn_forward.1} parent=5 // pred_check
      _
    $region10: #{nature_cnn_forward.1} parent=5 // pred_check_branch
      %292 = sbr.rel (%p289) target = $region12
    $region11: #{nature_cnn_forward.1} parent=5 // pred_region
      %s293 = ssub.s32 %s17, 1
      // Predicated region
      $region13: #{nature_cnn_forward.1} parent=11 // pred_check
        %p294 = pneg %p64
      $region14: #{nature_cnn_forward.1} parent=11 // pred_check_branch
        %296 = sbr.rel (%p294) target = $region16
      $region15: #{nature_cnn_forward.1} parent=11 // pred_region
        _
      $region16: #{nature_cnn_forward.1} parent=11 // pred_fallthru
        _
      // Predicated region
      $region17: #{nature_cnn_forward.1} parent=11 // pred_check
        %p297 = pneg %p85
      $region18: #{nature_cnn_forward.1} parent=11 // pred_check_branch
        %299 = sbr.rel (%p297) target = $region20
      $region19: #{nature_cnn_forward.1} parent=11 // pred_region
        _
      $region20: #{nature_cnn_forward.1} parent=11 // pred_fallthru
        _
      // Predicated region
      $region21: #{nature_cnn_forward.1} parent=11 // pred_check
        %p300 = pneg %p106
      $region22: #{nature_cnn_forward.1} parent=11 // pred_check_branch
        %302 = sbr.rel (%p300) target = $region24
      $region23: #{nature_cnn_forward.1} parent=11 // pred_region
        _
      $region24: #{nature_cnn_forward.1} parent=11 // pred_fallthru
        _
      // Predicated region
      $region25: #{nature_cnn_forward.1} parent=11 // pred_check
        %p303 = pneg %p127
      $region26: #{nature_cnn_forward.1} parent=11 // pred_check_branch
        %305 = sbr.rel (%p303) target = $region28
      $region27: #{nature_cnn_forward.1} parent=11 // pred_region
        _
      $region28: #{nature_cnn_forward.1} parent=11 // pred_fallthru
        _
      // Predicated region
      $region29: #{nature_cnn_forward.1} parent=11 // pred_check
        %p306 = pneg %p148
      $region30: #{nature_cnn_forward.1} parent=11 // pred_check_branch
        %308 = sbr.rel (%p306) target = $region32
      $region31: #{nature_cnn_forward.1} parent=11 // pred_region
        _
      $region32: #{nature_cnn_forward.1} parent=11 // pred_fallthru
        _
      // Predicated region
      $region33: #{nature_cnn_forward.1} parent=11 // pred_check
        %p309 = pneg %p169
      $region34: #{nature_cnn_forward.1} parent=11 // pred_check_branch
        %311 = sbr.rel (%p309) target = $region36
      $region35: #{nature_cnn_forward.1} parent=11 // pred_region
        _
      $region36: #{nature_cnn_forward.1} parent=11 // pred_fallthru
        _
      // Predicated region
      $region37: #{nature_cnn_forward.1} parent=11 // pred_check
        %p312 = pneg %p190
      $region38: #{nature_cnn_forward.1} parent=11 // pred_check_branch
        %314 = sbr.rel (%p312) target = $region40
      $region39: #{nature_cnn_forward.1} parent=11 // pred_region
        _
      $region40: #{nature_cnn_forward.1} parent=11 // pred_fallthru
        _
      // Predicated region
      $region41: #{nature_cnn_forward.1} parent=11 // pred_check
        %p315 = pneg %p211
      $region42: #{nature_cnn_forward.1} parent=11 // pred_check_branch
        %317 = sbr.rel (%p315) target = $region44
      $region43: #{nature_cnn_forward.1} parent=11 // pred_region
        _
      $region44: #{nature_cnn_forward.1} parent=11 // pred_fallthru
        _
      // Predicated region
      $region45: #{nature_cnn_forward.1} parent=11 // pred_check
        %p318 = pneg %p232
      $region46: #{nature_cnn_forward.1} parent=11 // pred_check_branch
        %320 = sbr.rel (%p318) target = $region48
      $region47: #{nature_cnn_forward.1} parent=11 // pred_region
        _
      $region48: #{nature_cnn_forward.1} parent=11 // pred_fallthru
        _
      // Predicated region
      $region49: #{nature_cnn_forward.1} parent=11 // pred_check
        %p321 = pneg %p253
      $region50: #{nature_cnn_forward.1} parent=11 // pred_check_branch
        %323 = sbr.rel (%p321) target = $region52
      $region51: #{nature_cnn_forward.1} parent=11 // pred_region
        _
      $region52: #{nature_cnn_forward.1} parent=11 // pred_fallthru
        _
    $region12: #{nature_cnn_forward.1} parent=5 // pred_fallthru
      _
    %p324 = scmp.lt.s32.totalorder %s17, 2
    // Predicated region
    $region53: #{nature_cnn_forward.1} parent=5 // pred_check
      %p325 = pneg %p324
    $region54: #{nature_cnn_forward.1} parent=5 // pred_check_branch
      %327 = sbr.rel (%p325) target = $region56
    $region55: #{nature_cnn_forward.1} parent=5 // pred_region
      // Predicated region
      $region57: #{nature_cnn_forward.1} parent=55 // pred_check
        %p328 = pneg %p37
      $region58: #{nature_cnn_forward.1} parent=55 // pred_check_branch
        %330 = sbr.rel (%p328) target = $region60
      $region59: #{nature_cnn_forward.1} parent=55 // pred_region
        %p331 = scmp.lt.s32.totalorder %s17, 1
        %s332 = scalar_select %p331, %s17, 1
        %s333 = smul.addr %s332, 16
        %s334 = smul.addr %s333, 4
        %s335 = scalar_lea.vmem %s0, %s334
      $region60: #{nature_cnn_forward.1} parent=55 // pred_fallthru
        _
    $region56: #{nature_cnn_forward.1} parent=5 // pred_fallthru
      _
    %p336 = scmp.le.s32.totalorder 1, %s17
    %p337 = scmp.lt.s32.totalorder %s17, 3
    %p338 = pnand %p336, %p337
    %p339 = pneg %p338
    // Predicated region
    $region61: #{nature_cnn_forward.1} parent=5 // pred_check
      _
    $region62: #{nature_cnn_forward.1} parent=5 // pred_check_branch
      %341 = sbr.rel (%p338) target = $region64
    $region63: #{nature_cnn_forward.1} parent=5 // pred_region
      %s342 = ssub.s32 %s17, 1
      %p343 = scmp.lt.s32.totalorder %s22, 1
      %s344 = scalar_select %p343, %s22, 1
      %s345 = smul.addr %s344, 16
      %s346 = smul.addr %s345, 4
      %s347 = scalar_lea.vmem %s0, %s346
      %p348 = pneg %p43
      %p349 = pneg %p40
      %p350 = pneg %p64
      %p351 = pneg %p61
      %p352 = pneg %p85
      %p353 = pneg %p82
      %p354 = pneg %p106
      %p355 = pneg %p103
      %p356 = pneg %p127
      %p357 = pneg %p124
      %p358 = pneg %p148
      %p359 = pneg %p145
      %p360 = pneg %p169
      %p361 = pneg %p166
      %p362 = pneg %p190
      %p363 = pneg %p187
      %p364 = pneg %p211
      %p365 = pneg %p208
      %p366 = pneg %p232
      %p367 = pneg %p229
      %p368 = pneg %p253
      %p369 = pneg %p250
      %p370 = pneg %p279
      %p371 = pneg %p276
      %p372 = scmp.lt.s32.totalorder %s22, 1
      %s373 = scalar_select %p372, %s22, 1
      %s374 = smul.addr %s373, 4
      %s375 = scalar_lea.vmem %s11, %s374
      %p376 = scmp.lt.s32.totalorder %s22, 1
      %s377 = scalar_select %p376, %s22, 1
      %s378 = smul.addr %s377, 16
      %s379 = smul.addr %s378, 4
      %s380 = scalar_lea.vmem %s0, %s379
      %p381 = scmp.lt.s32.totalorder %s22, 1
      %s382 = scalar_select %p381, %s22, 1
      %s383 = smul.addr %s382, 4
      %s384 = scalar_lea.vmem %s11, %s383
      %v386 = vld [vmem:[%s380] sm:$0xff]
      %v387 = vld [vmem:[%s380 + $0x8] sm:$0xff]
      %v388 = vld [vmem:[%s380 + $0x10] sm:$0xff]
      %v389 = vld [vmem:[%s380 + $0x18] sm:$0xff]
      %v390 = vld [vmem:[%s380 + $0x20] sm:$0xff]
      %v391 = vld [vmem:[%s380 + $0x28] sm:$0xff]
      %v392 = vld [vmem:[%s380 + $0x30] sm:$0xff]
      %v393 = vld [vmem:[%s380 + $0x38] sm:$0xff]
      %v394 = vld [vmem:[%s1] sm:$0xf]
      %v395 = vld [vmem:[%s1 + $0x4] sm:$0xf]
      %v396 = vld [vmem:[%s1 + $0x8] sm:$0xf]
      %v397 = vld [vmem:[%s1 + $0xc] sm:$0xf]
      %v398 = vld [vmem:[%s1 + $0x10] sm:$0xf]
      %v399 = vld [vmem:[%s1 + $0x14] sm:$0xf]
      %v400 = vld [vmem:[%s1 + $0x18] sm:$0xf]
      %v401 = vld [vmem:[%s1 + $0x1c] sm:$0xf]
      %v402 = vld [vmem:[%s1 + $0x20] sm:$0xf]
      %v403 = vld [vmem:[%s1 + $0x24] sm:$0xf]
      %v404 = vld [vmem:[%s1 + $0x28] sm:$0xf]
      %v405 = vld [vmem:[%s1 + $0x2c] sm:$0xf]
      %v406 = vld [vmem:[%s1 + $0x30] sm:$0xf]
      %v407 = vld [vmem:[%s1 + $0x34] sm:$0xf]
      %v408 = vld [vmem:[%s1 + $0x38] sm:$0xf]
      %v409 = vld [vmem:[%s1 + $0x3c] sm:$0xf]
      %v410 = vld [vmem:[%s1 + $0x40] sm:$0xf]
      %v411 = vld [vmem:[%s1 + $0x44] sm:$0xf]
      %v412 = vld [vmem:[%s1 + $0x48] sm:$0xf]
      %v413 = vld [vmem:[%s1 + $0x4c] sm:$0xf]
      %v414 = vld [vmem:[%s1 + $0x50] sm:$0xf]
      %v415 = vld [vmem:[%s1 + $0x54] sm:$0xf]
      %v416 = vld [vmem:[%s1 + $0x58] sm:$0xf]
      %v417 = vld [vmem:[%s1 + $0x5c] sm:$0xf]
      %v418 = vld [vmem:[%s1 + $0x60] sm:$0xf]
      %v419 = vld [vmem:[%s1 + $0x64] sm:$0xf]
      %v420 = vld [vmem:[%s1 + $0x68] sm:$0xf]
      %v421 = vld [vmem:[%s1 + $0x6c] sm:$0xf]
      %v422 = vld [vmem:[%s1 + $0x70] sm:$0xf]
      %v423 = vld [vmem:[%s1 + $0x74] sm:$0xf]
      %v424 = vld [vmem:[%s1 + $0x78] sm:$0xf]
      %v425 = vld [vmem:[%s1 + $0x7c] sm:$0xf]
      %v426 = vld [vmem:[%s2] sm:$0x1]
      %v428 = vperm.slane %v426, 0
      %v438 = vunpack.c.l.b16 %v386
      %v439 = vunpack.c.h.b16 %v386
      %v440 = vunpack.c.l.b16 %v387
      %v441 = vunpack.c.h.b16 %v387
      %v442 = vunpack.c.l.b16 %v388
      %v443 = vunpack.c.h.b16 %v388
      %v444 = vunpack.c.l.b16 %v389
      %v445 = vunpack.c.h.b16 %v389
      %v446 = vunpack.c.l.b16 %v390
      %v447 = vunpack.c.h.b16 %v390
      %v448 = vunpack.c.l.b16 %v391
      %v449 = vunpack.c.h.b16 %v391
      %v450 = vunpack.c.l.b16 %v392
      %v451 = vunpack.c.h.b16 %v392
      %v452 = vunpack.c.l.b16 %v393
      %v453 = vunpack.c.h.b16 %v393
      %v454 = vpack.c.b16 %v440, %v438
      %v455 = vpack.c.b16 %v441, %v439
      %v456 = vpack.c.b16 %v444, %v442
      %v457 = vpack.c.b16 %v445, %v443
      %v458 = vpack.c.b16 %v448, %v446
      %v459 = vpack.c.b16 %v449, %v447
      %v460 = vpack.c.b16 %v452, %v450
      %v461 = vpack.c.b16 %v453, %v451
      %v502 = vunpack.c.l.b16 %v394
      %v503 = vunpack.c.l.b16 %v395
      %v504 = vunpack.c.l.b16 %v396
      %v505 = vunpack.c.l.b16 %v397
      %v506 = vunpack.c.l.b16 %v398
      %v507 = vunpack.c.l.b16 %v399
      %v508 = vunpack.c.l.b16 %v400
      %v509 = vunpack.c.l.b16 %v401
      %v510 = vunpack.c.l.b16 %v402
      %v511 = vunpack.c.l.b16 %v403
      %v512 = vunpack.c.l.b16 %v404
      %v513 = vunpack.c.l.b16 %v405
      %v514 = vunpack.c.l.b16 %v406
      %v515 = vunpack.c.l.b16 %v407
      %v516 = vunpack.c.l.b16 %v408
      %v517 = vunpack.c.l.b16 %v409
      %v518 = vunpack.c.l.b16 %v410
      %v519 = vunpack.c.l.b16 %v411
      %v520 = vunpack.c.l.b16 %v412
      %v521 = vunpack.c.l.b16 %v413
      %v522 = vunpack.c.l.b16 %v414
      %v523 = vunpack.c.l.b16 %v415
      %v524 = vunpack.c.l.b16 %v416
      %v525 = vunpack.c.l.b16 %v417
      %v526 = vunpack.c.l.b16 %v418
      %v527 = vunpack.c.l.b16 %v419
      %v528 = vunpack.c.l.b16 %v420
      %v529 = vunpack.c.l.b16 %v421
      %v530 = vunpack.c.l.b16 %v422
      %v531 = vunpack.c.l.b16 %v423
      %v532 = vunpack.c.l.b16 %v424
      %v533 = vunpack.c.l.b16 %v425
      %v534 = vpack.c.b16 %v503, %v502
      %v535 = vpack.c.b16 %v505, %v504
      %v536 = vpack.c.b16 %v507, %v506
      %v537 = vpack.c.b16 %v509, %v508
      %v538 = vpack.c.b16 %v511, %v510
      %v539 = vpack.c.b16 %v513, %v512
      %v540 = vpack.c.b16 %v515, %v514
      %v541 = vpack.c.b16 %v517, %v516
      %v542 = vpack.c.b16 %v519, %v518
      %v543 = vpack.c.b16 %v521, %v520
      %v544 = vpack.c.b16 %v523, %v522
      %v545 = vpack.c.b16 %v525, %v524
      %v546 = vpack.c.b16 %v527, %v526
      %v547 = vpack.c.b16 %v529, %v528
      %v548 = vpack.c.b16 %v531, %v530
      %v549 = vpack.c.b16 %v533, %v532
      %566 = vmatpush.bf16.msra.mxu0 %v541
      %567 = vmatpush.bf16.msra.mxu0 %v540
      %568 = vmatpush.bf16.msra.mxu0 %v539
      %569 = vmatpush.bf16.msra.mxu0 %v538
      %570 = vmatpush.bf16.msra.mxu0 %v537
      %571 = vmatpush.bf16.msra.mxu0 %v536
      %572 = vmatpush.bf16.msra.mxu0 %v535
      %573 = vmatpush.bf16.msra.mxu0 %v534
      %574 = vmatmul.bf16.gmra.mxu0 %v454
      %v575 = vpop.f32.mrf.mxu0
      %v576 = vadd.f32 %v428, %v575
      %v577 = vpop.f32.mrf.mxu0
      %v578 = vadd.f32 %v428, %v577
      %579 = vmatmul.bf16.gmra.mxu0 %v456
      %v580 = vpop.f32.mrf.mxu0
      %v581 = vadd.f32 %v428, %v580
      %v582 = vpop.f32.mrf.mxu0
      %v583 = vadd.f32 %v428, %v582
      %584 = vmatmul.bf16.gmra.mxu0 %v458
      %v585 = vpop.f32.mrf.mxu0
      %v586 = vadd.f32 %v428, %v585
      %v587 = vpop.f32.mrf.mxu0
      %v588 = vadd.f32 %v428, %v587
      %589 = vmatmul.bf16.gmra.mxu0 %v460
      %v590 = vpop.f32.mrf.mxu0
      %v591 = vadd.f32 %v428, %v590
      %v592 = vpop.f32.mrf.mxu0
      %v593 = vadd.f32 %v428, %v592
      %594 = vdwg.mxu0
      %595 = vmatpush.bf16.msra.mxu0 %v549
      %596 = vmatpush.bf16.msra.mxu0 %v548
      %597 = vmatpush.bf16.msra.mxu0 %v547
      %598 = vmatpush.bf16.msra.mxu0 %v546
      %599 = vmatpush.bf16.msra.mxu0 %v545
      %600 = vmatpush.bf16.msra.mxu0 %v544
      %601 = vmatpush.bf16.msra.mxu0 %v543
      %602 = vmatpush.bf16.msra.mxu0 %v542
      %603 = vmatmul.bf16.gmra.mxu0 %v455
      %v604 = vpop.f32.mrf.mxu0
      %v605 = vadd.f32 %v576, %v604
      %v606 = vpop.f32.mrf.mxu0
      %v607 = vadd.f32 %v578, %v606
      %608 = vmatmul.bf16.gmra.mxu0 %v457
      %v609 = vpop.f32.mrf.mxu0
      %v610 = vadd.f32 %v581, %v609
      %v611 = vpop.f32.mrf.mxu0
      %v612 = vadd.f32 %v583, %v611
      %613 = vmatmul.bf16.gmra.mxu0 %v459
      %v614 = vpop.f32.mrf.mxu0
      %v615 = vadd.f32 %v586, %v614
      %v616 = vpop.f32.mrf.mxu0
      %v617 = vadd.f32 %v588, %v616
      %618 = vmatmul.bf16.gmra.mxu0 %v461
      %v619 = vpop.f32.mrf.mxu0
      %v620 = vadd.f32 %v591, %v619
      %v621 = vpop.f32.mrf.mxu0
      %v622 = vadd.f32 %v593, %v621
      %623 = vdwg.mxu0
      %v624 = vmax.f32 %v605, 0.0
      %v625 = vmax.f32 %v607, 0.0
      %v626 = vmax.f32 %v610, 0.0
      %v627 = vmax.f32 %v612, 0.0
      %v628 = vmax.f32 %v615, 0.0
      %v629 = vmax.f32 %v617, 0.0
      %v630 = vmax.f32 %v620, 0.0
      %v631 = vmax.f32 %v622, 0.0
      %v632 = vpack.c.bf16 %v625, %v624
      %v633 = vpack.c.bf16 %v627, %v626
      %v634 = vpack.c.bf16 %v629, %v628
      %v635 = vpack.c.bf16 %v631, %v630
      %v636 = vld [vmem:[%s3] sm:$0xf]
      %v637 = vld [vmem:[%s3 + $0x4] sm:$0x1]
      %v640 = vunpack.c.l.b16 %v636
      %v641 = vunpack.c.l.b16 %v637
      %v642 = vpack.c.b16 %v641, %v640
      %vm643 = vcmask 523264
      %v645 = vsel %vm643, %v642, 0
      %647 = vmatpush.bf16.msra.mxu0 0
      %648 = vmatpush.bf16.msra.mxu0 0
      %649 = vmatpush.bf16.msra.mxu0 0
      %650 = vmatpush.bf16.msra.mxu0 0
      %651 = vmatpush.bf16.msra.mxu0 %v635
      %652 = vmatpush.bf16.msra.mxu0 %v634
      %653 = vmatpush.bf16.msra.mxu0 %v633
      %654 = vmatpush.bf16.msra.mxu0 %v632
      %655 = vmatmul.bf16.gmra.mxu0 %v645
      %v656 = vpop.f32.mrf.mxu0
      %v657 = vadd.f32 0.0, %v656
      %v658 = vpop.f32.mrf.mxu0
      %v659 = vadd.f32 0.0, %v658
      %660 = vdwg.mxu0
      %v661 = vpack.c.bf16 %v659, %v657
      %v662 = vld [vmem:[%s4] sm:$0xf]
      %v663 = vld [vmem:[%s4 + $0x4] sm:$0xf]
      %v664 = vld [vmem:[%s4 + $0x8] sm:$0xf]
      %v665 = vld [vmem:[%s4 + $0xc] sm:$0xf]
      %s666 = scalar_lea.vmem %s3, 8
      %v667 = vld [vmem:[%s666] sm:$0xf]
      %v668 = vld [vmem:[%s666 + $0x4] sm:$0x1]
      %v671 = vunpack.c.l.b16 %v667
      %v672 = vunpack.c.l.b16 %v668
      %v673 = vpack.c.b16 %v672, %v671
      %v675 = vsel %vm643, %v673, 0
      %677 = vmatpush.bf16.msra.mxu0 0
      %678 = vmatpush.bf16.msra.mxu0 0
      %679 = vmatpush.bf16.msra.mxu0 0
      %680 = vmatpush.bf16.msra.mxu0 0
      %681 = vmatpush.bf16.msra.mxu0 %v635
      %682 = vmatpush.bf16.msra.mxu0 %v634
      %683 = vmatpush.bf16.msra.mxu0 %v633
      %684 = vmatpush.bf16.msra.mxu0 %v632
      %685 = vmatmul.bf16.gmra.mxu0 %v675
      %v686 = vpop.f32.mrf.mxu0
      %v687 = vadd.f32 0.0, %v686
      %v688 = vpop.f32.mrf.mxu0
      %v689 = vadd.f32 0.0, %v688
      %690 = vdwg.mxu0
      %v691 = vpack.c.bf16 %v689, %v687
      %s692 = scalar_lea.vmem %s4, 16
      %v693 = vld [vmem:[%s692] sm:$0xf]
      %v694 = vld [vmem:[%s692 + $0x4] sm:$0xf]
      %v695 = vld [vmem:[%s692 + $0x8] sm:$0xf]
      %v696 = vld [vmem:[%s692 + $0xc] sm:$0xf]
      %v701 = vunpack.c.l.b16 %v693
      %v702 = vunpack.c.l.b16 %v694
      %v703 = vunpack.c.l.b16 %v695
      %v704 = vunpack.c.l.b16 %v696
      %v705 = vpack.c.b16 %v702, %v701
      %v706 = vpack.c.b16 %v704, %v703
      %vm709 = vcmask 261120
      %v711 = vsel %vm709, %v691, 0
      %713 = vmatpush.bf16.msra.mxu0 0
      %714 = vmatpush.bf16.msra.mxu0 0
      %715 = vmatpush.bf16.msra.mxu0 0
      %716 = vmatpush.bf16.msra.mxu0 0
      %717 = vmatpush.bf16.msra.mxu0 0
      %718 = vmatpush.bf16.msra.mxu0 0
      %719 = vmatpush.bf16.msra.mxu0 %v706
      %720 = vmatpush.bf16.msra.mxu0 %v705
      %721 = vmatmul.bf16.gmra.mxu0 %v711
      %v722 = vpop.f32.mrf.mxu0
      %v723 = vadd.f32 0.0, %v722
      %v724 = vpop.f32.mrf.mxu0
      %v725 = vadd.f32 0.0, %v724
      %726 = vdwg.mxu0
      %v731 = vunpack.c.l.b16 %v662
      %v732 = vunpack.c.l.b16 %v663
      %v733 = vunpack.c.l.b16 %v664
      %v734 = vunpack.c.l.b16 %v665
      %v735 = vpack.c.b16 %v732, %v731
      %v736 = vpack.c.b16 %v734, %v733
      %v740 = vsel %vm709, %v661, 0
      %742 = vmatpush.bf16.msra.mxu0 0
      %743 = vmatpush.bf16.msra.mxu0 0
      %744 = vmatpush.bf16.msra.mxu0 0
      %745 = vmatpush.bf16.msra.mxu0 0
      %746 = vmatpush.bf16.msra.mxu0 0
      %747 = vmatpush.bf16.msra.mxu0 0
      %748 = vmatpush.bf16.msra.mxu0 %v736
      %749 = vmatpush.bf16.msra.mxu0 %v735
      %750 = vmatmul.bf16.gmra.mxu0 %v740
      %v751 = vpop.f32.mrf.mxu0
      %v752 = vadd.f32 %v723, %v751
      %v753 = vpop.f32.mrf.mxu0
      %v754 = vadd.f32 %v725, %v753
      %755 = vdwg.mxu0
      %s756 = scalar_lea.vmem %s3, 16
      %v757 = vld [vmem:[%s756] sm:$0xf]
      %v758 = vld [vmem:[%s756 + $0x4] sm:$0x1]
      %v761 = vunpack.c.l.b16 %v757
      %v762 = vunpack.c.l.b16 %v758
      %v763 = vpack.c.b16 %v762, %v761
      %v765 = vsel %vm643, %v763, 0
      %767 = vmatpush.bf16.msra.mxu0 0
      %768 = vmatpush.bf16.msra.mxu0 0
      %769 = vmatpush.bf16.msra.mxu0 0
      %770 = vmatpush.bf16.msra.mxu0 0
      %771 = vmatpush.bf16.msra.mxu0 %v635
      %772 = vmatpush.bf16.msra.mxu0 %v634
      %773 = vmatpush.bf16.msra.mxu0 %v633
      %774 = vmatpush.bf16.msra.mxu0 %v632
      %775 = vmatmul.bf16.gmra.mxu0 %v765
      %v776 = vpop.f32.mrf.mxu0
      %v777 = vadd.f32 0.0, %v776
      %v778 = vpop.f32.mrf.mxu0
      %v779 = vadd.f32 0.0, %v778
      %780 = vdwg.mxu0
      %v781 = vpack.c.bf16 %v779, %v777
      %s782 = scalar_lea.vmem %s4, 32
      %v783 = vld [vmem:[%s782] sm:$0xf]
      %v784 = vld [vmem:[%s782 + $0x4] sm:$0xf]
      %v785 = vld [vmem:[%s782 + $0x8] sm:$0xf]
      %v786 = vld [vmem:[%s782 + $0xc] sm:$0xf]
      %v791 = vunpack.c.l.b16 %v783
      %v792 = vunpack.c.l.b16 %v784
      %v793 = vunpack.c.l.b16 %v785
      %v794 = vunpack.c.l.b16 %v786
      %v795 = vpack.c.b16 %v792, %v791
      %v796 = vpack.c.b16 %v794, %v793
      %v800 = vsel %vm709, %v781, 0
      %802 = vmatpush.bf16.msra.mxu0 0
      %803 = vmatpush.bf16.msra.mxu0 0
      %804 = vmatpush.bf16.msra.mxu0 0
      %805 = vmatpush.bf16.msra.mxu0 0
      %806 = vmatpush.bf16.msra.mxu0 0
      %807 = vmatpush.bf16.msra.mxu0 0
      %808 = vmatpush.bf16.msra.mxu0 %v796
      %809 = vmatpush.bf16.msra.mxu0 %v795
      %810 = vmatmul.bf16.gmra.mxu0 %v800
      %v811 = vpop.f32.mrf.mxu0
      %v812 = vadd.f32 0.0, %v811
      %v813 = vpop.f32.mrf.mxu0
      %v814 = vadd.f32 0.0, %v813
      %815 = vdwg.mxu0
      %v816 = vadd.f32 %v752, %v812
      %v817 = vadd.f32 %v754, %v814
      %s818 = scalar_lea.vmem %s3, 24
      %v819 = vld [vmem:[%s818] sm:$0xf]
      %v820 = vld [vmem:[%s818 + $0x4] sm:$0x1]
      %v823 = vunpack.c.l.b16 %v819
      %v824 = vunpack.c.l.b16 %v820
      %v825 = vpack.c.b16 %v824, %v823
      %v827 = vsel %vm643, %v825, 0
      %829 = vmatpush.bf16.msra.mxu0 0
      %830 = vmatpush.bf16.msra.mxu0 0
      %831 = vmatpush.bf16.msra.mxu0 0
      %832 = vmatpush.bf16.msra.mxu0 0
      %833 = vmatpush.bf16.msra.mxu0 %v635
      %834 = vmatpush.bf16.msra.mxu0 %v634
      %835 = vmatpush.bf16.msra.mxu0 %v633
      %836 = vmatpush.bf16.msra.mxu0 %v632
      %837 = vmatmul.bf16.gmra.mxu0 %v827
      %v838 = vpop.f32.mrf.mxu0
      %v839 = vadd.f32 0.0, %v838
      %v840 = vpop.f32.mrf.mxu0
      %v841 = vadd.f32 0.0, %v840
      %842 = vdwg.mxu0
      %v843 = vpack.c.bf16 %v841, %v839
      %s844 = scalar_lea.vmem %s4, 48
      %v845 = vld [vmem:[%s844] sm:$0xf]
      %v846 = vld [vmem:[%s844 + $0x4] sm:$0xf]
      %v847 = vld [vmem:[%s844 + $0x8] sm:$0xf]
      %v848 = vld [vmem:[%s844 + $0xc] sm:$0xf]
      %v853 = vunpack.c.l.b16 %v845
      %v854 = vunpack.c.l.b16 %v846
      %v855 = vunpack.c.l.b16 %v847
      %v856 = vunpack.c.l.b16 %v848
      %v857 = vpack.c.b16 %v854, %v853
      %v858 = vpack.c.b16 %v856, %v855
      %v862 = vsel %vm709, %v843, 0
      %864 = vmatpush.bf16.msra.mxu0 0
      %865 = vmatpush.bf16.msra.mxu0 0
      %866 = vmatpush.bf16.msra.mxu0 0
      %867 = vmatpush.bf16.msra.mxu0 0
      %868 = vmatpush.bf16.msra.mxu0 0
      %869 = vmatpush.bf16.msra.mxu0 0
      %870 = vmatpush.bf16.msra.mxu0 %v858
      %871 = vmatpush.bf16.msra.mxu0 %v857
      %872 = vmatmul.bf16.gmra.mxu0 %v862
      %v873 = vpop.f32.mrf.mxu0
      %v874 = vadd.f32 0.0, %v873
      %v875 = vpop.f32.mrf.mxu0
      %v876 = vadd.f32 0.0, %v875
      %877 = vdwg.mxu0
      %v878 = vadd.f32 %v816, %v874
      %v879 = vadd.f32 %v817, %v876
      %s880 = scalar_lea.vmem %s3, 32
      %v881 = vld [vmem:[%s880] sm:$0xf]
      %v882 = vld [vmem:[%s880 + $0x4] sm:$0x1]
      %v885 = vunpack.c.l.b16 %v881
      %v886 = vunpack.c.l.b16 %v882
      %v887 = vpack.c.b16 %v886, %v885
      %v889 = vsel %vm643, %v887, 0
      %891 = vmatpush.bf16.msra.mxu0 0
      %892 = vmatpush.bf16.msra.mxu0 0
      %893 = vmatpush.bf16.msra.mxu0 0
      %894 = vmatpush.bf16.msra.mxu0 0
      %895 = vmatpush.bf16.msra.mxu0 %v635
      %896 = vmatpush.bf16.msra.mxu0 %v634
      %897 = vmatpush.bf16.msra.mxu0 %v633
      %898 = vmatpush.bf16.msra.mxu0 %v632
      %899 = vmatmul.bf16.gmra.mxu0 %v889
      %v900 = vpop.f32.mrf.mxu0
      %v901 = vadd.f32 0.0, %v900
      %v902 = vpop.f32.mrf.mxu0
      %v903 = vadd.f32 0.0, %v902
      %904 = vdwg.mxu0
      %v905 = vpack.c.bf16 %v903, %v901
      %s906 = scalar_lea.vmem %s4, 64
      %v907 = vld [vmem:[%s906] sm:$0xf]
      %v908 = vld [vmem:[%s906 + $0x4] sm:$0xf]
      %v909 = vld [vmem:[%s906 + $0x8] sm:$0xf]
      %v910 = vld [vmem:[%s906 + $0xc] sm:$0xf]
      %v915 = vunpack.c.l.b16 %v907
      %v916 = vunpack.c.l.b16 %v908
      %v917 = vunpack.c.l.b16 %v909
      %v918 = vunpack.c.l.b16 %v910
      %v919 = vpack.c.b16 %v916, %v915
      %v920 = vpack.c.b16 %v918, %v917
      %v924 = vsel %vm709, %v905, 0
      %926 = vmatpush.bf16.msra.mxu0 0
      %927 = vmatpush.bf16.msra.mxu0 0
      %928 = vmatpush.bf16.msra.mxu0 0
      %929 = vmatpush.bf16.msra.mxu0 0
      %930 = vmatpush.bf16.msra.mxu0 0
      %931 = vmatpush.bf16.msra.mxu0 0
      %932 = vmatpush.bf16.msra.mxu0 %v920
      %933 = vmatpush.bf16.msra.mxu0 %v919
      %934 = vmatmul.bf16.gmra.mxu0 %v924
      %v935 = vpop.f32.mrf.mxu0
      %v936 = vadd.f32 0.0, %v935
      %v937 = vpop.f32.mrf.mxu0
      %v938 = vadd.f32 0.0, %v937
      %939 = vdwg.mxu0
      %v940 = vadd.f32 %v878, %v936
      %v941 = vadd.f32 %v879, %v938
      %s942 = scalar_lea.vmem %s3, 40
      %v943 = vld [vmem:[%s942] sm:$0xf]
      %v944 = vld [vmem:[%s942 + $0x4] sm:$0x1]
      %v947 = vunpack.c.l.b16 %v943
      %v948 = vunpack.c.l.b16 %v944
      %v949 = vpack.c.b16 %v948, %v947
      %v951 = vsel %vm643, %v949, 0
      %953 = vmatpush.bf16.msra.mxu0 0
      %954 = vmatpush.bf16.msra.mxu0 0
      %955 = vmatpush.bf16.msra.mxu0 0
      %956 = vmatpush.bf16.msra.mxu0 0
      %957 = vmatpush.bf16.msra.mxu0 %v635
      %958 = vmatpush.bf16.msra.mxu0 %v634
      %959 = vmatpush.bf16.msra.mxu0 %v633
      %960 = vmatpush.bf16.msra.mxu0 %v632
      %961 = vmatmul.bf16.gmra.mxu0 %v951
      %v962 = vpop.f32.mrf.mxu0
      %v963 = vadd.f32 0.0, %v962
      %v964 = vpop.f32.mrf.mxu0
      %v965 = vadd.f32 0.0, %v964
      %966 = vdwg.mxu0
      %v967 = vpack.c.bf16 %v965, %v963
      %s968 = scalar_lea.vmem %s4, 80
      %v969 = vld [vmem:[%s968] sm:$0xf]
      %v970 = vld [vmem:[%s968 + $0x4] sm:$0xf]
      %v971 = vld [vmem:[%s968 + $0x8] sm:$0xf]
      %v972 = vld [vmem:[%s968 + $0xc] sm:$0xf]
      %v977 = vunpack.c.l.b16 %v969
      %v978 = vunpack.c.l.b16 %v970
      %v979 = vunpack.c.l.b16 %v971
      %v980 = vunpack.c.l.b16 %v972
      %v981 = vpack.c.b16 %v978, %v977
      %v982 = vpack.c.b16 %v980, %v979
      %v986 = vsel %vm709, %v967, 0
      %988 = vmatpush.bf16.msra.mxu0 0
      %989 = vmatpush.bf16.msra.mxu0 0
      %990 = vmatpush.bf16.msra.mxu0 0
      %991 = vmatpush.bf16.msra.mxu0 0
      %992 = vmatpush.bf16.msra.mxu0 0
      %993 = vmatpush.bf16.msra.mxu0 0
      %994 = vmatpush.bf16.msra.mxu0 %v982
      %995 = vmatpush.bf16.msra.mxu0 %v981
      %996 = vmatmul.bf16.gmra.mxu0 %v986
      %v997 = vpop.f32.mrf.mxu0
      %v998 = vadd.f32 0.0, %v997
      %v999 = vpop.f32.mrf.mxu0
      %v1000 = vadd.f32 0.0, %v999
      %1001 = vdwg.mxu0
      %v1002 = vadd.f32 %v940, %v998
      %v1003 = vadd.f32 %v941, %v1000
      %s1004 = scalar_lea.vmem %s3, 48
      %v1005 = vld [vmem:[%s1004] sm:$0xf]
      %v1006 = vld [vmem:[%s1004 + $0x4] sm:$0x1]
      %v1009 = vunpack.c.l.b16 %v1005
      %v1010 = vunpack.c.l.b16 %v1006
      %v1011 = vpack.c.b16 %v1010, %v1009
      %v1013 = vsel %vm643, %v1011, 0
      %1015 = vmatpush.bf16.msra.mxu0 0
      %1016 = vmatpush.bf16.msra.mxu0 0
      %1017 = vmatpush.bf16.msra.mxu0 0
      %1018 = vmatpush.bf16.msra.mxu0 0
      %1019 = vmatpush.bf16.msra.mxu0 %v635
      %1020 = vmatpush.bf16.msra.mxu0 %v634
      %1021 = vmatpush.bf16.msra.mxu0 %v633
      %1022 = vmatpush.bf16.msra.mxu0 %v632
      %1023 = vmatmul.bf16.gmra.mxu0 %v1013
      %v1024 = vpop.f32.mrf.mxu0
      %v1025 = vadd.f32 0.0, %v1024
      %v1026 = vpop.f32.mrf.mxu0
      %v1027 = vadd.f32 0.0, %v1026
      %1028 = vdwg.mxu0
      %v1029 = vpack.c.bf16 %v1027, %v1025
      %s1030 = scalar_lea.vmem %s4, 96
      %v1031 = vld [vmem:[%s1030] sm:$0xf]
      %v1032 = vld [vmem:[%s1030 + $0x4] sm:$0xf]
      %v1033 = vld [vmem:[%s1030 + $0x8] sm:$0xf]
      %v1034 = vld [vmem:[%s1030 + $0xc] sm:$0xf]
      %v1039 = vunpack.c.l.b16 %v1031
      %v1040 = vunpack.c.l.b16 %v1032
      %v1041 = vunpack.c.l.b16 %v1033
      %v1042 = vunpack.c.l.b16 %v1034
      %v1043 = vpack.c.b16 %v1040, %v1039
      %v1044 = vpack.c.b16 %v1042, %v1041
      %v1048 = vsel %vm709, %v1029, 0
      %1050 = vmatpush.bf16.msra.mxu0 0
      %1051 = vmatpush.bf16.msra.mxu0 0
      %1052 = vmatpush.bf16.msra.mxu0 0
      %1053 = vmatpush.bf16.msra.mxu0 0
      %1054 = vmatpush.bf16.msra.mxu0 0
      %1055 = vmatpush.bf16.msra.mxu0 0
      %1056 = vmatpush.bf16.msra.mxu0 %v1044
      %1057 = vmatpush.bf16.msra.mxu0 %v1043
      %1058 = vmatmul.bf16.gmra.mxu0 %v1048
      %v1059 = vpop.f32.mrf.mxu0
      %v1060 = vadd.f32 0.0, %v1059
      %v1061 = vpop.f32.mrf.mxu0
      %v1062 = vadd.f32 0.0, %v1061
      %1063 = vdwg.mxu0
      %v1064 = vadd.f32 %v1002, %v1060
      %v1065 = vadd.f32 %v1003, %v1062
      %s1066 = scalar_lea.vmem %s3, 56
      %v1067 = vld [vmem:[%s1066] sm:$0xf]
      %v1068 = vld [vmem:[%s1066 + $0x4] sm:$0x1]
      %v1071 = vunpack.c.l.b16 %v1067
      %v1072 = vunpack.c.l.b16 %v1068
      %v1073 = vpack.c.b16 %v1072, %v1071
      %v1075 = vsel %vm643, %v1073, 0
      %1077 = vmatpush.bf16.msra.mxu0 0
      %1078 = vmatpush.bf16.msra.mxu0 0
      %1079 = vmatpush.bf16.msra.mxu0 0
      %1080 = vmatpush.bf16.msra.mxu0 0
      %1081 = vmatpush.bf16.msra.mxu0 %v635
      %1082 = vmatpush.bf16.msra.mxu0 %v634
      %1083 = vmatpush.bf16.msra.mxu0 %v633
      %1084 = vmatpush.bf16.msra.mxu0 %v632
      %1085 = vmatmul.bf16.gmra.mxu0 %v1075
      %v1086 = vpop.f32.mrf.mxu0
      %v1087 = vadd.f32 0.0, %v1086
      %v1088 = vpop.f32.mrf.mxu0
      %v1089 = vadd.f32 0.0, %v1088
      %1090 = vdwg.mxu0
      %v1091 = vpack.c.bf16 %v1089, %v1087
      %s1092 = scalar_lea.vmem %s4, 112
      %v1093 = vld [vmem:[%s1092] sm:$0xf]
      %v1094 = vld [vmem:[%s1092 + $0x4] sm:$0xf]
      %v1095 = vld [vmem:[%s1092 + $0x8] sm:$0xf]
      %v1096 = vld [vmem:[%s1092 + $0xc] sm:$0xf]
      %v1101 = vunpack.c.l.b16 %v1093
      %v1102 = vunpack.c.l.b16 %v1094
      %v1103 = vunpack.c.l.b16 %v1095
      %v1104 = vunpack.c.l.b16 %v1096
      %v1105 = vpack.c.b16 %v1102, %v1101
      %v1106 = vpack.c.b16 %v1104, %v1103
      %v1110 = vsel %vm709, %v1091, 0
      %1112 = vmatpush.bf16.msra.mxu0 0
      %1113 = vmatpush.bf16.msra.mxu0 0
      %1114 = vmatpush.bf16.msra.mxu0 0
      %1115 = vmatpush.bf16.msra.mxu0 0
      %1116 = vmatpush.bf16.msra.mxu0 0
      %1117 = vmatpush.bf16.msra.mxu0 0
      %1118 = vmatpush.bf16.msra.mxu0 %v1106
      %1119 = vmatpush.bf16.msra.mxu0 %v1105
      %1120 = vmatmul.bf16.gmra.mxu0 %v1110
      %v1121 = vpop.f32.mrf.mxu0
      %v1122 = vadd.f32 0.0, %v1121
      %v1123 = vpop.f32.mrf.mxu0
      %v1124 = vadd.f32 0.0, %v1123
      %1125 = vdwg.mxu0
      %v1126 = vadd.f32 %v1064, %v1122
      %v1127 = vadd.f32 %v1065, %v1124
      %s1128 = scalar_lea.vmem %s3, 64
      %v1129 = vld [vmem:[%s1128] sm:$0xf]
      %v1130 = vld [vmem:[%s1128 + $0x4] sm:$0x1]
      %v1133 = vunpack.c.l.b16 %v1129
      %v1134 = vunpack.c.l.b16 %v1130
      %v1135 = vpack.c.b16 %v1134, %v1133
      %v1137 = vsel %vm643, %v1135, 0
      %1139 = vmatpush.bf16.msra.mxu0 0
      %1140 = vmatpush.bf16.msra.mxu0 0
      %1141 = vmatpush.bf16.msra.mxu0 0
      %1142 = vmatpush.bf16.msra.mxu0 0
      %1143 = vmatpush.bf16.msra.mxu0 %v635
      %1144 = vmatpush.bf16.msra.mxu0 %v634
      %1145 = vmatpush.bf16.msra.mxu0 %v633
      %1146 = vmatpush.bf16.msra.mxu0 %v632
      %1147 = vmatmul.bf16.gmra.mxu0 %v1137
      %v1148 = vpop.f32.mrf.mxu0
      %v1149 = vadd.f32 0.0, %v1148
      %v1150 = vpop.f32.mrf.mxu0
      %v1151 = vadd.f32 0.0, %v1150
      %1152 = vdwg.mxu0
      %v1153 = vpack.c.bf16 %v1151, %v1149
      %s1154 = scalar_lea.vmem %s4, 128
      %v1155 = vld [vmem:[%s1154] sm:$0xf]
      %v1156 = vld [vmem:[%s1154 + $0x4] sm:$0xf]
      %v1157 = vld [vmem:[%s1154 + $0x8] sm:$0xf]
      %v1158 = vld [vmem:[%s1154 + $0xc] sm:$0xf]
      %v1163 = vunpack.c.l.b16 %v1155
      %v1164 = vunpack.c.l.b16 %v1156
      %v1165 = vunpack.c.l.b16 %v1157
      %v1166 = vunpack.c.l.b16 %v1158
      %v1167 = vpack.c.b16 %v1164, %v1163
      %v1168 = vpack.c.b16 %v1166, %v1165
      %v1172 = vsel %vm709, %v1153, 0
      %1174 = vmatpush.bf16.msra.mxu0 0
      %1175 = vmatpush.bf16.msra.mxu0 0
      %1176 = vmatpush.bf16.msra.mxu0 0
      %1177 = vmatpush.bf16.msra.mxu0 0
      %1178 = vmatpush.bf16.msra.mxu0 0
      %1179 = vmatpush.bf16.msra.mxu0 0
      %1180 = vmatpush.bf16.msra.mxu0 %v1168
      %1181 = vmatpush.bf16.msra.mxu0 %v1167
      %1182 = vmatmul.bf16.gmra.mxu0 %v1172
      %v1183 = vpop.f32.mrf.mxu0
      %v1184 = vadd.f32 0.0, %v1183
      %v1185 = vpop.f32.mrf.mxu0
      %v1186 = vadd.f32 0.0, %v1185
      %1187 = vdwg.mxu0
      %v1188 = vadd.f32 %v1126, %v1184
      %v1189 = vadd.f32 %v1127, %v1186
      %s1190 = scalar_lea.vmem %s3, 72
      %v1191 = vld [vmem:[%s1190] sm:$0xf]
      %v1192 = vld [vmem:[%s1190 + $0x4] sm:$0x1]
      %v1195 = vunpack.c.l.b16 %v1191
      %v1196 = vunpack.c.l.b16 %v1192
      %v1197 = vpack.c.b16 %v1196, %v1195
      %v1199 = vsel %vm643, %v1197, 0
      %1201 = vmatpush.bf16.msra.mxu0 0
      %1202 = vmatpush.bf16.msra.mxu0 0
      %1203 = vmatpush.bf16.msra.mxu0 0
      %1204 = vmatpush.bf16.msra.mxu0 0
      %1205 = vmatpush.bf16.msra.mxu0 %v635
      %1206 = vmatpush.bf16.msra.mxu0 %v634
      %1207 = vmatpush.bf16.msra.mxu0 %v633
      %1208 = vmatpush.bf16.msra.mxu0 %v632
      %1209 = vmatmul.bf16.gmra.mxu0 %v1199
      %v1210 = vpop.f32.mrf.mxu0
      %v1211 = vadd.f32 0.0, %v1210
      %v1212 = vpop.f32.mrf.mxu0
      %v1213 = vadd.f32 0.0, %v1212
      %1214 = vdwg.mxu0
      %v1215 = vpack.c.bf16 %v1213, %v1211
      %s1216 = scalar_lea.vmem %s4, 144
      %v1217 = vld [vmem:[%s1216] sm:$0xf]
      %v1218 = vld [vmem:[%s1216 + $0x4] sm:$0xf]
      %v1219 = vld [vmem:[%s1216 + $0x8] sm:$0xf]
      %v1220 = vld [vmem:[%s1216 + $0xc] sm:$0xf]
      %v1225 = vunpack.c.l.b16 %v1217
      %v1226 = vunpack.c.l.b16 %v1218
      %v1227 = vunpack.c.l.b16 %v1219
      %v1228 = vunpack.c.l.b16 %v1220
      %v1229 = vpack.c.b16 %v1226, %v1225
      %v1230 = vpack.c.b16 %v1228, %v1227
      %v1234 = vsel %vm709, %v1215, 0
      %1236 = vmatpush.bf16.msra.mxu0 0
      %1237 = vmatpush.bf16.msra.mxu0 0
      %1238 = vmatpush.bf16.msra.mxu0 0
      %1239 = vmatpush.bf16.msra.mxu0 0
      %1240 = vmatpush.bf16.msra.mxu0 0
      %1241 = vmatpush.bf16.msra.mxu0 0
      %1242 = vmatpush.bf16.msra.mxu0 %v1230
      %1243 = vmatpush.bf16.msra.mxu0 %v1229
      %1244 = vmatmul.bf16.gmra.mxu0 %v1234
      %v1245 = vpop.f32.mrf.mxu0
      %v1246 = vadd.f32 0.0, %v1245
      %v1247 = vpop.f32.mrf.mxu0
      %v1248 = vadd.f32 0.0, %v1247
      %1249 = vdwg.mxu0
      %v1250 = vadd.f32 %v1188, %v1246
      %v1251 = vadd.f32 %v1189, %v1248
      %s1252 = scalar_lea.vmem %s3, 80
      %v1253 = vld [vmem:[%s1252] sm:$0xf]
      %v1254 = vld [vmem:[%s1252 + $0x4] sm:$0x1]
      %v1257 = vunpack.c.l.b16 %v1253
      %v1258 = vunpack.c.l.b16 %v1254
      %v1259 = vpack.c.b16 %v1258, %v1257
      %v1261 = vsel %vm643, %v1259, 0
      %1263 = vmatpush.bf16.msra.mxu0 0
      %1264 = vmatpush.bf16.msra.mxu0 0
      %1265 = vmatpush.bf16.msra.mxu0 0
      %1266 = vmatpush.bf16.msra.mxu0 0
      %1267 = vmatpush.bf16.msra.mxu0 %v635
      %1268 = vmatpush.bf16.msra.mxu0 %v634
      %1269 = vmatpush.bf16.msra.mxu0 %v633
      %1270 = vmatpush.bf16.msra.mxu0 %v632
      %1271 = vmatmul.bf16.gmra.mxu0 %v1261
      %v1272 = vpop.f32.mrf.mxu0
      %v1273 = vadd.f32 0.0, %v1272
      %v1274 = vpop.f32.mrf.mxu0
      %v1275 = vadd.f32 0.0, %v1274
      %1276 = vdwg.mxu0
      %v1277 = vpack.c.bf16 %v1275, %v1273
      %s1278 = scalar_lea.vmem %s4, 160
      %v1279 = vld [vmem:[%s1278] sm:$0xf]
      %v1280 = vld [vmem:[%s1278 + $0x4] sm:$0xf]
      %v1281 = vld [vmem:[%s1278 + $0x8] sm:$0xf]
      %v1282 = vld [vmem:[%s1278 + $0xc] sm:$0xf]
      %v1287 = vunpack.c.l.b16 %v1279
      %v1288 = vunpack.c.l.b16 %v1280
      %v1289 = vunpack.c.l.b16 %v1281
      %v1290 = vunpack.c.l.b16 %v1282
      %v1291 = vpack.c.b16 %v1288, %v1287
      %v1292 = vpack.c.b16 %v1290, %v1289
      %v1296 = vsel %vm709, %v1277, 0
      %1298 = vmatpush.bf16.msra.mxu0 0
      %1299 = vmatpush.bf16.msra.mxu0 0
      %1300 = vmatpush.bf16.msra.mxu0 0
      %1301 = vmatpush.bf16.msra.mxu0 0
      %1302 = vmatpush.bf16.msra.mxu0 0
      %1303 = vmatpush.bf16.msra.mxu0 0
      %1304 = vmatpush.bf16.msra.mxu0 %v1292
      %1305 = vmatpush.bf16.msra.mxu0 %v1291
      %1306 = vmatmul.bf16.gmra.mxu0 %v1296
      %v1307 = vpop.f32.mrf.mxu0
      %v1308 = vadd.f32 0.0, %v1307
      %v1309 = vpop.f32.mrf.mxu0
      %v1310 = vadd.f32 0.0, %v1309
      %1311 = vdwg.mxu0
      %v1312 = vadd.f32 %v1250, %v1308
      %v1313 = vadd.f32 %v1251, %v1310
      %s1314 = scalar_lea.vmem %s3, 88
      %v1315 = vld [vmem:[%s1314] sm:$0xf]
      %v1316 = vld [vmem:[%s1314 + $0x4] sm:$0x1]
      %v1319 = vunpack.c.l.b16 %v1315
      %v1320 = vunpack.c.l.b16 %v1316
      %v1321 = vpack.c.b16 %v1320, %v1319
      %v1323 = vsel %vm643, %v1321, 0
      %1325 = vmatpush.bf16.msra.mxu0 0
      %1326 = vmatpush.bf16.msra.mxu0 0
      %1327 = vmatpush.bf16.msra.mxu0 0
      %1328 = vmatpush.bf16.msra.mxu0 0
      %1329 = vmatpush.bf16.msra.mxu0 %v635
      %1330 = vmatpush.bf16.msra.mxu0 %v634
      %1331 = vmatpush.bf16.msra.mxu0 %v633
      %1332 = vmatpush.bf16.msra.mxu0 %v632
      %1333 = vmatmul.bf16.gmra.mxu0 %v1323
      %v1334 = vpop.f32.mrf.mxu0
      %v1335 = vadd.f32 0.0, %v1334
      %v1336 = vpop.f32.mrf.mxu0
      %v1337 = vadd.f32 0.0, %v1336
      %1338 = vdwg.mxu0
      %v1339 = vpack.c.bf16 %v1337, %v1335
      %s1340 = scalar_lea.vmem %s4, 176
      %v1341 = vld [vmem:[%s1340] sm:$0xf]
      %v1342 = vld [vmem:[%s1340 + $0x4] sm:$0xf]
      %v1343 = vld [vmem:[%s1340 + $0x8] sm:$0xf]
      %v1344 = vld [vmem:[%s1340 + $0xc] sm:$0xf]
      %v1349 = vunpack.c.l.b16 %v1341
      %v1350 = vunpack.c.l.b16 %v1342
      %v1351 = vunpack.c.l.b16 %v1343
      %v1352 = vunpack.c.l.b16 %v1344
      %v1353 = vpack.c.b16 %v1350, %v1349
      %v1354 = vpack.c.b16 %v1352, %v1351
      %v1358 = vsel %vm709, %v1339, 0
      %1360 = vmatpush.bf16.msra.mxu0 0
      %1361 = vmatpush.bf16.msra.mxu0 0
      %1362 = vmatpush.bf16.msra.mxu0 0
      %1363 = vmatpush.bf16.msra.mxu0 0
      %1364 = vmatpush.bf16.msra.mxu0 0
      %1365 = vmatpush.bf16.msra.mxu0 0
      %1366 = vmatpush.bf16.msra.mxu0 %v1354
      %1367 = vmatpush.bf16.msra.mxu0 %v1353
      %1368 = vmatmul.bf16.gmra.mxu0 %v1358
      %v1369 = vpop.f32.mrf.mxu0
      %v1370 = vadd.f32 0.0, %v1369
      %v1371 = vpop.f32.mrf.mxu0
      %v1372 = vadd.f32 0.0, %v1371
      %1373 = vdwg.mxu0
      %v1374 = vadd.f32 %v1312, %v1370
      %v1375 = vadd.f32 %v1313, %v1372
      %s1376 = scalar_lea.vmem %s3, 96
      %v1377 = vld [vmem:[%s1376] sm:$0xf]
      %v1378 = vld [vmem:[%s1376 + $0x4] sm:$0x1]
      %v1381 = vunpack.c.l.b16 %v1377
      %v1382 = vunpack.c.l.b16 %v1378
      %v1383 = vpack.c.b16 %v1382, %v1381
      %v1385 = vsel %vm643, %v1383, 0
      %1387 = vmatpush.bf16.msra.mxu0 0
      %1388 = vmatpush.bf16.msra.mxu0 0
      %1389 = vmatpush.bf16.msra.mxu0 0
      %1390 = vmatpush.bf16.msra.mxu0 0
      %1391 = vmatpush.bf16.msra.mxu0 %v635
      %1392 = vmatpush.bf16.msra.mxu0 %v634
      %1393 = vmatpush.bf16.msra.mxu0 %v633
      %1394 = vmatpush.bf16.msra.mxu0 %v632
      %1395 = vmatmul.bf16.gmra.mxu0 %v1385
      %v1396 = vpop.f32.mrf.mxu0
      %v1397 = vadd.f32 0.0, %v1396
      %v1398 = vpop.f32.mrf.mxu0
      %v1399 = vadd.f32 0.0, %v1398
      %1400 = vdwg.mxu0
      %v1401 = vpack.c.bf16 %v1399, %v1397
      %s1402 = scalar_lea.vmem %s4, 192
      %v1403 = vld [vmem:[%s1402] sm:$0xf]
      %v1404 = vld [vmem:[%s1402 + $0x4] sm:$0xf]
      %v1405 = vld [vmem:[%s1402 + $0x8] sm:$0xf]
      %v1406 = vld [vmem:[%s1402 + $0xc] sm:$0xf]
      %v1411 = vunpack.c.l.b16 %v1403
      %v1412 = vunpack.c.l.b16 %v1404
      %v1413 = vunpack.c.l.b16 %v1405
      %v1414 = vunpack.c.l.b16 %v1406
      %v1415 = vpack.c.b16 %v1412, %v1411
      %v1416 = vpack.c.b16 %v1414, %v1413
      %v1420 = vsel %vm709, %v1401, 0
      %1422 = vmatpush.bf16.msra.mxu0 0
      %1423 = vmatpush.bf16.msra.mxu0 0
      %1424 = vmatpush.bf16.msra.mxu0 0
      %1425 = vmatpush.bf16.msra.mxu0 0
      %1426 = vmatpush.bf16.msra.mxu0 0
      %1427 = vmatpush.bf16.msra.mxu0 0
      %1428 = vmatpush.bf16.msra.mxu0 %v1416
      %1429 = vmatpush.bf16.msra.mxu0 %v1415
      %1430 = vmatmul.bf16.gmra.mxu0 %v1420
      %v1431 = vpop.f32.mrf.mxu0
      %v1432 = vadd.f32 0.0, %v1431
      %v1433 = vpop.f32.mrf.mxu0
      %v1434 = vadd.f32 0.0, %v1433
      %1435 = vdwg.mxu0
      %v1436 = vadd.f32 %v1374, %v1432
      %v1437 = vadd.f32 %v1375, %v1434
      %s1438 = scalar_lea.vmem %s3, 104
      %v1439 = vld [vmem:[%s1438] sm:$0xf]
      %v1440 = vld [vmem:[%s1438 + $0x4] sm:$0x1]
      %v1443 = vunpack.c.l.b16 %v1439
      %v1444 = vunpack.c.l.b16 %v1440
      %v1445 = vpack.c.b16 %v1444, %v1443
      %v1447 = vsel %vm643, %v1445, 0
      %1449 = vmatpush.bf16.msra.mxu0 0
      %1450 = vmatpush.bf16.msra.mxu0 0
      %1451 = vmatpush.bf16.msra.mxu0 0
      %1452 = vmatpush.bf16.msra.mxu0 0
      %1453 = vmatpush.bf16.msra.mxu0 %v635
      %1454 = vmatpush.bf16.msra.mxu0 %v634
      %1455 = vmatpush.bf16.msra.mxu0 %v633
      %1456 = vmatpush.bf16.msra.mxu0 %v632
      %1457 = vmatmul.bf16.gmra.mxu0 %v1447
      %v1458 = vpop.f32.mrf.mxu0
      %v1459 = vadd.f32 0.0, %v1458
      %v1460 = vpop.f32.mrf.mxu0
      %v1461 = vadd.f32 0.0, %v1460
      %1462 = vdwg.mxu0
      %v1463 = vpack.c.bf16 %v1461, %v1459
      %s1464 = scalar_lea.vmem %s4, 208
      %v1465 = vld [vmem:[%s1464] sm:$0xf]
      %v1466 = vld [vmem:[%s1464 + $0x4] sm:$0xf]
      %v1467 = vld [vmem:[%s1464 + $0x8] sm:$0xf]
      %v1468 = vld [vmem:[%s1464 + $0xc] sm:$0xf]
      %v1473 = vunpack.c.l.b16 %v1465
      %v1474 = vunpack.c.l.b16 %v1466
      %v1475 = vunpack.c.l.b16 %v1467
      %v1476 = vunpack.c.l.b16 %v1468
      %v1477 = vpack.c.b16 %v1474, %v1473
      %v1478 = vpack.c.b16 %v1476, %v1475
      %v1482 = vsel %vm709, %v1463, 0
      %1484 = vmatpush.bf16.msra.mxu0 0
      %1485 = vmatpush.bf16.msra.mxu0 0
      %1486 = vmatpush.bf16.msra.mxu0 0
      %1487 = vmatpush.bf16.msra.mxu0 0
      %1488 = vmatpush.bf16.msra.mxu0 0
      %1489 = vmatpush.bf16.msra.mxu0 0
      %1490 = vmatpush.bf16.msra.mxu0 %v1478
      %1491 = vmatpush.bf16.msra.mxu0 %v1477
      %1492 = vmatmul.bf16.gmra.mxu0 %v1482
      %v1493 = vpop.f32.mrf.mxu0
      %v1494 = vadd.f32 0.0, %v1493
      %v1495 = vpop.f32.mrf.mxu0
      %v1496 = vadd.f32 0.0, %v1495
      %1497 = vdwg.mxu0
      %v1498 = vadd.f32 %v1436, %v1494
      %v1499 = vadd.f32 %v1437, %v1496
      %s1500 = scalar_lea.vmem %s3, 112
      %v1501 = vld [vmem:[%s1500] sm:$0xf]
      %v1502 = vld [vmem:[%s1500 + $0x4] sm:$0x1]
      %v1505 = vunpack.c.l.b16 %v1501
      %v1506 = vunpack.c.l.b16 %v1502
      %v1507 = vpack.c.b16 %v1506, %v1505
      %v1509 = vsel %vm643, %v1507, 0
      %1511 = vmatpush.bf16.msra.mxu0 0
      %1512 = vmatpush.bf16.msra.mxu0 0
      %1513 = vmatpush.bf16.msra.mxu0 0
      %1514 = vmatpush.bf16.msra.mxu0 0
      %1515 = vmatpush.bf16.msra.mxu0 %v635
      %1516 = vmatpush.bf16.msra.mxu0 %v634
      %1517 = vmatpush.bf16.msra.mxu0 %v633
      %1518 = vmatpush.bf16.msra.mxu0 %v632
      %1519 = vmatmul.bf16.gmra.mxu0 %v1509
      %v1520 = vpop.f32.mrf.mxu0
      %v1521 = vadd.f32 0.0, %v1520
      %v1522 = vpop.f32.mrf.mxu0
      %v1523 = vadd.f32 0.0, %v1522
      %1524 = vdwg.mxu0
      %v1525 = vpack.c.bf16 %v1523, %v1521
      %s1526 = scalar_lea.vmem %s4, 224
      %v1527 = vld [vmem:[%s1526] sm:$0xf]
      %v1528 = vld [vmem:[%s1526 + $0x4] sm:$0xf]
      %v1529 = vld [vmem:[%s1526 + $0x8] sm:$0xf]
      %v1530 = vld [vmem:[%s1526 + $0xc] sm:$0xf]
      %v1535 = vunpack.c.l.b16 %v1527
      %v1536 = vunpack.c.l.b16 %v1528
      %v1537 = vunpack.c.l.b16 %v1529
      %v1538 = vunpack.c.l.b16 %v1530
      %v1539 = vpack.c.b16 %v1536, %v1535
      %v1540 = vpack.c.b16 %v1538, %v1537
      %v1544 = vsel %vm709, %v1525, 0
      %1546 = vmatpush.bf16.msra.mxu0 0
      %1547 = vmatpush.bf16.msra.mxu0 0
      %1548 = vmatpush.bf16.msra.mxu0 0
      %1549 = vmatpush.bf16.msra.mxu0 0
      %1550 = vmatpush.bf16.msra.mxu0 0
      %1551 = vmatpush.bf16.msra.mxu0 0
      %1552 = vmatpush.bf16.msra.mxu0 %v1540
      %1553 = vmatpush.bf16.msra.mxu0 %v1539
      %1554 = vmatmul.bf16.gmra.mxu0 %v1544
      %v1555 = vpop.f32.mrf.mxu0
      %v1556 = vadd.f32 0.0, %v1555
      %v1557 = vpop.f32.mrf.mxu0
      %v1558 = vadd.f32 0.0, %v1557
      %1559 = vdwg.mxu0
      %v1560 = vadd.f32 %v1498, %v1556
      %v1561 = vadd.f32 %v1499, %v1558
      %s1562 = scalar_lea.vmem %s3, 120
      %v1563 = vld [vmem:[%s1562] sm:$0xf]
      %v1564 = vld [vmem:[%s1562 + $0x4] sm:$0x1]
      %v1567 = vunpack.c.l.b16 %v1563
      %v1568 = vunpack.c.l.b16 %v1564
      %v1569 = vpack.c.b16 %v1568, %v1567
      %v1571 = vsel %vm643, %v1569, 0
      %1573 = vmatpush.bf16.msra.mxu0 0
      %1574 = vmatpush.bf16.msra.mxu0 0
      %1575 = vmatpush.bf16.msra.mxu0 0
      %1576 = vmatpush.bf16.msra.mxu0 0
      %1577 = vmatpush.bf16.msra.mxu0 %v635
      %1578 = vmatpush.bf16.msra.mxu0 %v634
      %1579 = vmatpush.bf16.msra.mxu0 %v633
      %1580 = vmatpush.bf16.msra.mxu0 %v632
      %1581 = vmatmul.bf16.gmra.mxu0 %v1571
      %v1582 = vpop.f32.mrf.mxu0
      %v1583 = vadd.f32 0.0, %v1582
      %v1584 = vpop.f32.mrf.mxu0
      %v1585 = vadd.f32 0.0, %v1584
      %1586 = vdwg.mxu0
      %v1587 = vpack.c.bf16 %v1585, %v1583
      %s1588 = scalar_lea.vmem %s4, 240
      %v1589 = vld [vmem:[%s1588] sm:$0xf]
      %v1590 = vld [vmem:[%s1588 + $0x4] sm:$0xf]
      %v1591 = vld [vmem:[%s1588 + $0x8] sm:$0xf]
      %v1592 = vld [vmem:[%s1588 + $0xc] sm:$0xf]
      %v1597 = vunpack.c.l.b16 %v1589
      %v1598 = vunpack.c.l.b16 %v1590
      %v1599 = vunpack.c.l.b16 %v1591
      %v1600 = vunpack.c.l.b16 %v1592
      %v1601 = vpack.c.b16 %v1598, %v1597
      %v1602 = vpack.c.b16 %v1600, %v1599
      %v1606 = vsel %vm709, %v1587, 0
      %1608 = vmatpush.bf16.msra.mxu0 0
      %1609 = vmatpush.bf16.msra.mxu0 0
      %1610 = vmatpush.bf16.msra.mxu0 0
      %1611 = vmatpush.bf16.msra.mxu0 0
      %1612 = vmatpush.bf16.msra.mxu0 0
      %1613 = vmatpush.bf16.msra.mxu0 0
      %1614 = vmatpush.bf16.msra.mxu0 %v1602
      %1615 = vmatpush.bf16.msra.mxu0 %v1601
      %1616 = vmatmul.bf16.gmra.mxu0 %v1606
      %v1617 = vpop.f32.mrf.mxu0
      %v1618 = vadd.f32 0.0, %v1617
      %v1619 = vpop.f32.mrf.mxu0
      %v1620 = vadd.f32 0.0, %v1619
      %1621 = vdwg.mxu0
      %v1622 = vadd.f32 %v1560, %v1618
      %v1623 = vadd.f32 %v1561, %v1620
      %v1624 = vld [vmem:[%s5] sm:$0x1]
      %v1626 = vperm.slane %v1624, 0
      %v1628 = vadd.f32 %v1622, %v1626
      %v1629 = vadd.f32 %v1623, %v1626
      %v1630 = vmax.f32 %v1628, 0.0
      %v1631 = vmax.f32 %v1629, 0.0
      %v1632 = vpack.c.bf16 %v1631, %v1630
      %v1633 = vld [vmem:[%s6] sm:$0x1]
      %vm1634 = vcmask 72704
      %v1636 = vsel %vm1634, %v1633, 0
      %vm1638 = vcmask 1043456
      %vm1639 = vcmask 1044480
      %v1640 = vsel %vm1638, 4294967295, 65535
      %v1641 = vsel %vm1639, %v1640, 0
      %v1643 = vand.u32 %v1632, %v1641
      %1645 = vmatpush.bf16.msra.mxu0 0
      %1646 = vmatpush.bf16.msra.mxu0 0
      %1647 = vmatpush.bf16.msra.mxu0 0
      %1648 = vmatpush.bf16.msra.mxu0 0
      %1649 = vmatpush.bf16.msra.mxu0 0
      %1650 = vmatpush.bf16.msra.mxu0 0
      %1651 = vmatpush.bf16.msra.mxu0 0
      %1652 = vmatpush.bf16.msra.mxu0 %v1643
      %1653 = vmatmul.bf16.gmra.mxu0 %v1636
      %v1654 = vpop.f32.mrf.mxu0
      %v1655 = vadd.f32 0.0, %v1654
      %v1656 = vpop.f32.mrf.mxu0
      %1657 = vdwg.mxu0
      %v1658 = vpack.c.bf16 %v1655, %v1655
      %v1659 = vld [vmem:[%s7] sm:$0xf]
      %v1660 = vld [vmem:[%s7 + $0x4] sm:$0xf]
      %v1661 = vld [vmem:[%s7 + $0x8] sm:$0xf]
      %v1662 = vld [vmem:[%s7 + $0xc] sm:$0xf]
      %v1663 = vld [vmem:[%s7 + $0x10] sm:$0xf]
      %v1664 = vld [vmem:[%s7 + $0x14] sm:$0xf]
      %v1665 = vld [vmem:[%s7 + $0x18] sm:$0xf]
      %v1666 = vld [vmem:[%s7 + $0x1c] sm:$0xf]
      %s1667 = scalar_lea.vmem %s6, 1
      %v1668 = vld [vmem:[%s1667] sm:$0x1]
      %v1670 = vsel %vm1634, %v1668, 0
      %1672 = vmatpush.bf16.msra.mxu0 0
      %1673 = vmatpush.bf16.msra.mxu0 0
      %1674 = vmatpush.bf16.msra.mxu0 0
      %1675 = vmatpush.bf16.msra.mxu0 0
      %1676 = vmatpush.bf16.msra.mxu0 0
      %1677 = vmatpush.bf16.msra.mxu0 0
      %1678 = vmatpush.bf16.msra.mxu0 0
      %1679 = vmatpush.bf16.msra.mxu0 %v1643
      %1680 = vmatmul.bf16.gmra.mxu0 %v1670
      %v1681 = vpop.f32.mrf.mxu0
      %v1682 = vadd.f32 0.0, %v1681
      %v1683 = vpop.f32.mrf.mxu0
      %1684 = vdwg.mxu0
      %v1685 = vpack.c.bf16 %v1682, %v1682
      %s1686 = scalar_lea.vmem %s7, 32
      %v1687 = vld [vmem:[%s1686] sm:$0xf]
      %v1688 = vld [vmem:[%s1686 + $0x4] sm:$0xf]
      %v1689 = vld [vmem:[%s1686 + $0x8] sm:$0xf]
      %v1690 = vld [vmem:[%s1686 + $0xc] sm:$0xf]
      %v1691 = vld [vmem:[%s1686 + $0x10] sm:$0xf]
      %v1692 = vld [vmem:[%s1686 + $0x14] sm:$0xf]
      %v1693 = vld [vmem:[%s1686 + $0x18] sm:$0xf]
      %v1694 = vld [vmem:[%s1686 + $0x1c] sm:$0xf]
      %v1703 = vunpack.c.l.b16 %v1687
      %v1704 = vunpack.c.l.b16 %v1688
      %v1705 = vunpack.c.l.b16 %v1689
      %v1706 = vunpack.c.l.b16 %v1690
      %v1707 = vunpack.c.l.b16 %v1691
      %v1708 = vunpack.c.l.b16 %v1692
      %v1709 = vunpack.c.l.b16 %v1693
      %v1710 = vunpack.c.l.b16 %v1694
      %v1711 = vpack.c.b16 %v1704, %v1703
      %v1712 = vpack.c.b16 %v1706, %v1705
      %v1713 = vpack.c.b16 %v1708, %v1707
      %v1714 = vpack.c.b16 %v1710, %v1709
      %v1720 = vsel %vm643, %v1685, 0
      %1722 = vmatpush.bf16.msra.mxu0 0
      %1723 = vmatpush.bf16.msra.mxu0 0
      %1724 = vmatpush.bf16.msra.mxu0 0
      %1725 = vmatpush.bf16.msra.mxu0 0
      %1726 = vmatpush.bf16.msra.mxu0 %v1714
      %1727 = vmatpush.bf16.msra.mxu0 %v1713
      %1728 = vmatpush.bf16.msra.mxu0 %v1712
      %1729 = vmatpush.bf16.msra.mxu0 %v1711
      %1730 = vmatmul.bf16.gmra.mxu0 %v1720
      %v1731 = vpop.f32.mrf.mxu0
      %v1732 = vadd.f32 0.0, %v1731
      %v1733 = vpop.f32.mrf.mxu0
      %1734 = vdwg.mxu0
      %v1743 = vunpack.c.l.b16 %v1659
      %v1744 = vunpack.c.l.b16 %v1660
      %v1745 = vunpack.c.l.b16 %v1661
      %v1746 = vunpack.c.l.b16 %v1662
      %v1747 = vunpack.c.l.b16 %v1663
      %v1748 = vunpack.c.l.b16 %v1664
      %v1749 = vunpack.c.l.b16 %v1665
      %v1750 = vunpack.c.l.b16 %v1666
      %v1751 = vpack.c.b16 %v1744, %v1743
      %v1752 = vpack.c.b16 %v1746, %v1745
      %v1753 = vpack.c.b16 %v1748, %v1747
      %v1754 = vpack.c.b16 %v1750, %v1749
      %v1760 = vsel %vm643, %v1658, 0
      %1762 = vmatpush.bf16.msra.mxu0 0
      %1763 = vmatpush.bf16.msra.mxu0 0
      %1764 = vmatpush.bf16.msra.mxu0 0
      %1765 = vmatpush.bf16.msra.mxu0 0
      %1766 = vmatpush.bf16.msra.mxu0 %v1754
      %1767 = vmatpush.bf16.msra.mxu0 %v1753
      %1768 = vmatpush.bf16.msra.mxu0 %v1752
      %1769 = vmatpush.bf16.msra.mxu0 %v1751
      %1770 = vmatmul.bf16.gmra.mxu0 %v1760
      %v1771 = vpop.f32.mrf.mxu0
      %v1772 = vadd.f32 %v1732, %v1771
      %v1773 = vpop.f32.mrf.mxu0
      %1774 = vdwg.mxu0
      %s1775 = scalar_lea.vmem %s6, 2
      %v1776 = vld [vmem:[%s1775] sm:$0x1]
      %v1778 = vsel %vm1634, %v1776, 0
      %1780 = vmatpush.bf16.msra.mxu0 0
      %1781 = vmatpush.bf16.msra.mxu0 0
      %1782 = vmatpush.bf16.msra.mxu0 0
      %1783 = vmatpush.bf16.msra.mxu0 0
      %1784 = vmatpush.bf16.msra.mxu0 0
      %1785 = vmatpush.bf16.msra.mxu0 0
      %1786 = vmatpush.bf16.msra.mxu0 0
      %1787 = vmatpush.bf16.msra.mxu0 %v1643
      %1788 = vmatmul.bf16.gmra.mxu0 %v1778
      %v1789 = vpop.f32.mrf.mxu0
      %v1790 = vadd.f32 0.0, %v1789
      %v1791 = vpop.f32.mrf.mxu0
      %1792 = vdwg.mxu0
      %v1793 = vpack.c.bf16 %v1790, %v1790
      %s1794 = scalar_lea.vmem %s7, 64
      %v1795 = vld [vmem:[%s1794] sm:$0xf]
      %v1796 = vld [vmem:[%s1794 + $0x4] sm:$0xf]
      %v1797 = vld [vmem:[%s1794 + $0x8] sm:$0xf]
      %v1798 = vld [vmem:[%s1794 + $0xc] sm:$0xf]
      %v1799 = vld [vmem:[%s1794 + $0x10] sm:$0xf]
      %v1800 = vld [vmem:[%s1794 + $0x14] sm:$0xf]
      %v1801 = vld [vmem:[%s1794 + $0x18] sm:$0xf]
      %v1802 = vld [vmem:[%s1794 + $0x1c] sm:$0xf]
      %v1811 = vunpack.c.l.b16 %v1795
      %v1812 = vunpack.c.l.b16 %v1796
      %v1813 = vunpack.c.l.b16 %v1797
      %v1814 = vunpack.c.l.b16 %v1798
      %v1815 = vunpack.c.l.b16 %v1799
      %v1816 = vunpack.c.l.b16 %v1800
      %v1817 = vunpack.c.l.b16 %v1801
      %v1818 = vunpack.c.l.b16 %v1802
      %v1819 = vpack.c.b16 %v1812, %v1811
      %v1820 = vpack.c.b16 %v1814, %v1813
      %v1821 = vpack.c.b16 %v1816, %v1815
      %v1822 = vpack.c.b16 %v1818, %v1817
      %v1828 = vsel %vm643, %v1793, 0
      %1830 = vmatpush.bf16.msra.mxu0 0
      %1831 = vmatpush.bf16.msra.mxu0 0
      %1832 = vmatpush.bf16.msra.mxu0 0
      %1833 = vmatpush.bf16.msra.mxu0 0
      %1834 = vmatpush.bf16.msra.mxu0 %v1822
      %1835 = vmatpush.bf16.msra.mxu0 %v1821
      %1836 = vmatpush.bf16.msra.mxu0 %v1820
      %1837 = vmatpush.bf16.msra.mxu0 %v1819
      %1838 = vmatmul.bf16.gmra.mxu0 %v1828
      %v1839 = vpop.f32.mrf.mxu0
      %v1840 = vadd.f32 0.0, %v1839
      %v1841 = vpop.f32.mrf.mxu0
      %1842 = vdwg.mxu0
      %v1843 = vadd.f32 %v1772, %v1840
      %s1844 = scalar_lea.vmem %s6, 3
      %v1845 = vld [vmem:[%s1844] sm:$0x1]
      %v1847 = vsel %vm1634, %v1845, 0
      %1849 = vmatpush.bf16.msra.mxu0 0
      %1850 = vmatpush.bf16.msra.mxu0 0
      %1851 = vmatpush.bf16.msra.mxu0 0
      %1852 = vmatpush.bf16.msra.mxu0 0
      %1853 = vmatpush.bf16.msra.mxu0 0
      %1854 = vmatpush.bf16.msra.mxu0 0
      %1855 = vmatpush.bf16.msra.mxu0 0
      %1856 = vmatpush.bf16.msra.mxu0 %v1643
      %1857 = vmatmul.bf16.gmra.mxu0 %v1847
      %v1858 = vpop.f32.mrf.mxu0
      %v1859 = vadd.f32 0.0, %v1858
      %v1860 = vpop.f32.mrf.mxu0
      %1861 = vdwg.mxu0
      %v1862 = vpack.c.bf16 %v1859, %v1859
      %s1863 = scalar_lea.vmem %s7, 96
      %v1864 = vld [vmem:[%s1863] sm:$0xf]
      %v1865 = vld [vmem:[%s1863 + $0x4] sm:$0xf]
      %v1866 = vld [vmem:[%s1863 + $0x8] sm:$0xf]
      %v1867 = vld [vmem:[%s1863 + $0xc] sm:$0xf]
      %v1868 = vld [vmem:[%s1863 + $0x10] sm:$0xf]
      %v1869 = vld [vmem:[%s1863 + $0x14] sm:$0xf]
      %v1870 = vld [vmem:[%s1863 + $0x18] sm:$0xf]
      %v1871 = vld [vmem:[%s1863 + $0x1c] sm:$0xf]
      %v1880 = vunpack.c.l.b16 %v1864
      %v1881 = vunpack.c.l.b16 %v1865
      %v1882 = vunpack.c.l.b16 %v1866
      %v1883 = vunpack.c.l.b16 %v1867
      %v1884 = vunpack.c.l.b16 %v1868
      %v1885 = vunpack.c.l.b16 %v1869
      %v1886 = vunpack.c.l.b16 %v1870
      %v1887 = vunpack.c.l.b16 %v1871
      %v1888 = vpack.c.b16 %v1881, %v1880
      %v1889 = vpack.c.b16 %v1883, %v1882
      %v1890 = vpack.c.b16 %v1885, %v1884
      %v1891 = vpack.c.b16 %v1887, %v1886
      %v1897 = vsel %vm643, %v1862, 0
      %1899 = vmatpush.bf16.msra.mxu0 0
      %1900 = vmatpush.bf16.msra.mxu0 0
      %1901 = vmatpush.bf16.msra.mxu0 0
      %1902 = vmatpush.bf16.msra.mxu0 0
      %1903 = vmatpush.bf16.msra.mxu0 %v1891
      %1904 = vmatpush.bf16.msra.mxu0 %v1890
      %1905 = vmatpush.bf16.msra.mxu0 %v1889
      %1906 = vmatpush.bf16.msra.mxu0 %v1888
      %1907 = vmatmul.bf16.gmra.mxu0 %v1897
      %v1908 = vpop.f32.mrf.mxu0
      %v1909 = vadd.f32 0.0, %v1908
      %v1910 = vpop.f32.mrf.mxu0
      %1911 = vdwg.mxu0
      %v1912 = vadd.f32 %v1843, %v1909
      %s1913 = scalar_lea.vmem %s6, 4
      %v1914 = vld [vmem:[%s1913] sm:$0x1]
      %v1916 = vsel %vm1634, %v1914, 0
      %1918 = vmatpush.bf16.msra.mxu0 0
      %1919 = vmatpush.bf16.msra.mxu0 0
      %1920 = vmatpush.bf16.msra.mxu0 0
      %1921 = vmatpush.bf16.msra.mxu0 0
      %1922 = vmatpush.bf16.msra.mxu0 0
      %1923 = vmatpush.bf16.msra.mxu0 0
      %1924 = vmatpush.bf16.msra.mxu0 0
      %1925 = vmatpush.bf16.msra.mxu0 %v1643
      %1926 = vmatmul.bf16.gmra.mxu0 %v1916
      %v1927 = vpop.f32.mrf.mxu0
      %v1928 = vadd.f32 0.0, %v1927
      %v1929 = vpop.f32.mrf.mxu0
      %1930 = vdwg.mxu0
      %v1931 = vpack.c.bf16 %v1928, %v1928
      %s1932 = scalar_lea.vmem %s7, 128
      %v1933 = vld [vmem:[%s1932] sm:$0xf]
      %v1934 = vld [vmem:[%s1932 + $0x4] sm:$0xf]
      %v1935 = vld [vmem:[%s1932 + $0x8] sm:$0xf]
      %v1936 = vld [vmem:[%s1932 + $0xc] sm:$0xf]
      %v1937 = vld [vmem:[%s1932 + $0x10] sm:$0xf]
      %v1938 = vld [vmem:[%s1932 + $0x14] sm:$0xf]
      %v1939 = vld [vmem:[%s1932 + $0x18] sm:$0xf]
      %v1940 = vld [vmem:[%s1932 + $0x1c] sm:$0xf]
      %v1949 = vunpack.c.l.b16 %v1933
      %v1950 = vunpack.c.l.b16 %v1934
      %v1951 = vunpack.c.l.b16 %v1935
      %v1952 = vunpack.c.l.b16 %v1936
      %v1953 = vunpack.c.l.b16 %v1937
      %v1954 = vunpack.c.l.b16 %v1938
      %v1955 = vunpack.c.l.b16 %v1939
      %v1956 = vunpack.c.l.b16 %v1940
      %v1957 = vpack.c.b16 %v1950, %v1949
      %v1958 = vpack.c.b16 %v1952, %v1951
      %v1959 = vpack.c.b16 %v1954, %v1953
      %v1960 = vpack.c.b16 %v1956, %v1955
      %v1966 = vsel %vm643, %v1931, 0
      %1968 = vmatpush.bf16.msra.mxu0 0
      %1969 = vmatpush.bf16.msra.mxu0 0
      %1970 = vmatpush.bf16.msra.mxu0 0
      %1971 = vmatpush.bf16.msra.mxu0 0
      %1972 = vmatpush.bf16.msra.mxu0 %v1960
      %1973 = vmatpush.bf16.msra.mxu0 %v1959
      %1974 = vmatpush.bf16.msra.mxu0 %v1958
      %1975 = vmatpush.bf16.msra.mxu0 %v1957
      %1976 = vmatmul.bf16.gmra.mxu0 %v1966
      %v1977 = vpop.f32.mrf.mxu0
      %v1978 = vadd.f32 0.0, %v1977
      %v1979 = vpop.f32.mrf.mxu0
      %1980 = vdwg.mxu0
      %v1981 = vadd.f32 %v1912, %v1978
      %s1982 = scalar_lea.vmem %s6, 5
      %v1983 = vld [vmem:[%s1982] sm:$0x1]
      %v1985 = vsel %vm1634, %v1983, 0
      %1987 = vmatpush.bf16.msra.mxu0 0
      %1988 = vmatpush.bf16.msra.mxu0 0
      %1989 = vmatpush.bf16.msra.mxu0 0
      %1990 = vmatpush.bf16.msra.mxu0 0
      %1991 = vmatpush.bf16.msra.mxu0 0
      %1992 = vmatpush.bf16.msra.mxu0 0
      %1993 = vmatpush.bf16.msra.mxu0 0
      %1994 = vmatpush.bf16.msra.mxu0 %v1643
      %1995 = vmatmul.bf16.gmra.mxu0 %v1985
      %v1996 = vpop.f32.mrf.mxu0
      %v1997 = vadd.f32 0.0, %v1996
      %v1998 = vpop.f32.mrf.mxu0
      %1999 = vdwg.mxu0
      %v2000 = vpack.c.bf16 %v1997, %v1997
      %s2001 = scalar_lea.vmem %s7, 160
      %v2002 = vld [vmem:[%s2001] sm:$0xf]
      %v2003 = vld [vmem:[%s2001 + $0x4] sm:$0xf]
      %v2004 = vld [vmem:[%s2001 + $0x8] sm:$0xf]
      %v2005 = vld [vmem:[%s2001 + $0xc] sm:$0xf]
      %v2006 = vld [vmem:[%s2001 + $0x10] sm:$0xf]
      %v2007 = vld [vmem:[%s2001 + $0x14] sm:$0xf]
      %v2008 = vld [vmem:[%s2001 + $0x18] sm:$0xf]
      %v2009 = vld [vmem:[%s2001 + $0x1c] sm:$0xf]
      %v2018 = vunpack.c.l.b16 %v2002
      %v2019 = vunpack.c.l.b16 %v2003
      %v2020 = vunpack.c.l.b16 %v2004
      %v2021 = vunpack.c.l.b16 %v2005
      %v2022 = vunpack.c.l.b16 %v2006
      %v2023 = vunpack.c.l.b16 %v2007
      %v2024 = vunpack.c.l.b16 %v2008
      %v2025 = vunpack.c.l.b16 %v2009
      %v2026 = vpack.c.b16 %v2019, %v2018
      %v2027 = vpack.c.b16 %v2021, %v2020
      %v2028 = vpack.c.b16 %v2023, %v2022
      %v2029 = vpack.c.b16 %v2025, %v2024
      %v2035 = vsel %vm643, %v2000, 0
      %2037 = vmatpush.bf16.msra.mxu0 0
      %2038 = vmatpush.bf16.msra.mxu0 0
      %2039 = vmatpush.bf16.msra.mxu0 0
      %2040 = vmatpush.bf16.msra.mxu0 0
      %2041 = vmatpush.bf16.msra.mxu0 %v2029
      %2042 = vmatpush.bf16.msra.mxu0 %v2028
      %2043 = vmatpush.bf16.msra.mxu0 %v2027
      %2044 = vmatpush.bf16.msra.mxu0 %v2026
      %2045 = vmatmul.bf16.gmra.mxu0 %v2035
      %v2046 = vpop.f32.mrf.mxu0
      %v2047 = vadd.f32 0.0, %v2046
      %v2048 = vpop.f32.mrf.mxu0
      %2049 = vdwg.mxu0
      %v2050 = vadd.f32 %v1981, %v2047
      %s2051 = scalar_lea.vmem %s6, 6
      %v2052 = vld [vmem:[%s2051] sm:$0x1]
      %v2054 = vsel %vm1634, %v2052, 0
      %2056 = vmatpush.bf16.msra.mxu0 0
      %2057 = vmatpush.bf16.msra.mxu0 0
      %2058 = vmatpush.bf16.msra.mxu0 0
      %2059 = vmatpush.bf16.msra.mxu0 0
      %2060 = vmatpush.bf16.msra.mxu0 0
      %2061 = vmatpush.bf16.msra.mxu0 0
      %2062 = vmatpush.bf16.msra.mxu0 0
      %2063 = vmatpush.bf16.msra.mxu0 %v1643
      %2064 = vmatmul.bf16.gmra.mxu0 %v2054
      %v2065 = vpop.f32.mrf.mxu0
      %v2066 = vadd.f32 0.0, %v2065
      %v2067 = vpop.f32.mrf.mxu0
      %2068 = vdwg.mxu0
      %v2069 = vpack.c.bf16 %v2066, %v2066
      %s2070 = scalar_lea.vmem %s7, 192
      %v2071 = vld [vmem:[%s2070] sm:$0xf]
      %v2072 = vld [vmem:[%s2070 + $0x4] sm:$0xf]
      %v2073 = vld [vmem:[%s2070 + $0x8] sm:$0xf]
      %v2074 = vld [vmem:[%s2070 + $0xc] sm:$0xf]
      %v2075 = vld [vmem:[%s2070 + $0x10] sm:$0xf]
      %v2076 = vld [vmem:[%s2070 + $0x14] sm:$0xf]
      %v2077 = vld [vmem:[%s2070 + $0x18] sm:$0xf]
      %v2078 = vld [vmem:[%s2070 + $0x1c] sm:$0xf]
      %v2087 = vunpack.c.l.b16 %v2071
      %v2088 = vunpack.c.l.b16 %v2072
      %v2089 = vunpack.c.l.b16 %v2073
      %v2090 = vunpack.c.l.b16 %v2074
      %v2091 = vunpack.c.l.b16 %v2075
      %v2092 = vunpack.c.l.b16 %v2076
      %v2093 = vunpack.c.l.b16 %v2077
      %v2094 = vunpack.c.l.b16 %v2078
      %v2095 = vpack.c.b16 %v2088, %v2087
      %v2096 = vpack.c.b16 %v2090, %v2089
      %v2097 = vpack.c.b16 %v2092, %v2091
      %v2098 = vpack.c.b16 %v2094, %v2093
      %v2104 = vsel %vm643, %v2069, 0
      %2106 = vmatpush.bf16.msra.mxu0 0
      %2107 = vmatpush.bf16.msra.mxu0 0
      %2108 = vmatpush.bf16.msra.mxu0 0
      %2109 = vmatpush.bf16.msra.mxu0 0
      %2110 = vmatpush.bf16.msra.mxu0 %v2098
      %2111 = vmatpush.bf16.msra.mxu0 %v2097
      %2112 = vmatpush.bf16.msra.mxu0 %v2096
      %2113 = vmatpush.bf16.msra.mxu0 %v2095
      %2114 = vmatmul.bf16.gmra.mxu0 %v2104
      %v2115 = vpop.f32.mrf.mxu0
      %v2116 = vadd.f32 0.0, %v2115
      %v2117 = vpop.f32.mrf.mxu0
      %2118 = vdwg.mxu0
      %v2119 = vadd.f32 %v2050, %v2116
      %s2120 = scalar_lea.vmem %s6, 7
      %v2121 = vld [vmem:[%s2120] sm:$0x1]
      %v2123 = vsel %vm1634, %v2121, 0
      %2125 = vmatpush.bf16.msra.mxu0 0
      %2126 = vmatpush.bf16.msra.mxu0 0
      %2127 = vmatpush.bf16.msra.mxu0 0
      %2128 = vmatpush.bf16.msra.mxu0 0
      %2129 = vmatpush.bf16.msra.mxu0 0
      %2130 = vmatpush.bf16.msra.mxu0 0
      %2131 = vmatpush.bf16.msra.mxu0 0
      %2132 = vmatpush.bf16.msra.mxu0 %v1643
      %2133 = vmatmul.bf16.gmra.mxu0 %v2123
      %v2134 = vpop.f32.mrf.mxu0
      %v2135 = vadd.f32 0.0, %v2134
      %v2136 = vpop.f32.mrf.mxu0
      %2137 = vdwg.mxu0
      %v2138 = vpack.c.bf16 %v2135, %v2135
      %s2139 = scalar_lea.vmem %s7, 224
      %v2140 = vld [vmem:[%s2139] sm:$0xf]
      %v2141 = vld [vmem:[%s2139 + $0x4] sm:$0xf]
      %v2142 = vld [vmem:[%s2139 + $0x8] sm:$0xf]
      %v2143 = vld [vmem:[%s2139 + $0xc] sm:$0xf]
      %v2144 = vld [vmem:[%s2139 + $0x10] sm:$0xf]
      %v2145 = vld [vmem:[%s2139 + $0x14] sm:$0xf]
      %v2146 = vld [vmem:[%s2139 + $0x18] sm:$0xf]
      %v2147 = vld [vmem:[%s2139 + $0x1c] sm:$0xf]
      %v2156 = vunpack.c.l.b16 %v2140
      %v2157 = vunpack.c.l.b16 %v2141
      %v2158 = vunpack.c.l.b16 %v2142
      %v2159 = vunpack.c.l.b16 %v2143
      %v2160 = vunpack.c.l.b16 %v2144
      %v2161 = vunpack.c.l.b16 %v2145
      %v2162 = vunpack.c.l.b16 %v2146
      %v2163 = vunpack.c.l.b16 %v2147
      %v2164 = vpack.c.b16 %v2157, %v2156
      %v2165 = vpack.c.b16 %v2159, %v2158
      %v2166 = vpack.c.b16 %v2161, %v2160
      %v2167 = vpack.c.b16 %v2163, %v2162
      %v2173 = vsel %vm643, %v2138, 0
      %2175 = vmatpush.bf16.msra.mxu0 0
      %2176 = vmatpush.bf16.msra.mxu0 0
      %2177 = vmatpush.bf16.msra.mxu0 0
      %2178 = vmatpush.bf16.msra.mxu0 0
      %2179 = vmatpush.bf16.msra.mxu0 %v2167
      %2180 = vmatpush.bf16.msra.mxu0 %v2166
      %2181 = vmatpush.bf16.msra.mxu0 %v2165
      %2182 = vmatpush.bf16.msra.mxu0 %v2164
      %2183 = vmatmul.bf16.gmra.mxu0 %v2173
      %v2184 = vpop.f32.mrf.mxu0
      %v2185 = vadd.f32 0.0, %v2184
      %v2186 = vpop.f32.mrf.mxu0
      %2187 = vdwg.mxu0
      %v2188 = vadd.f32 %v2119, %v2185
      %s2189 = scalar_lea.vmem %s6, 8
      %v2190 = vld [vmem:[%s2189] sm:$0x1]
      %v2192 = vsel %vm1634, %v2190, 0
      %2194 = vmatpush.bf16.msra.mxu0 0
      %2195 = vmatpush.bf16.msra.mxu0 0
      %2196 = vmatpush.bf16.msra.mxu0 0
      %2197 = vmatpush.bf16.msra.mxu0 0
      %2198 = vmatpush.bf16.msra.mxu0 0
      %2199 = vmatpush.bf16.msra.mxu0 0
      %2200 = vmatpush.bf16.msra.mxu0 0
      %2201 = vmatpush.bf16.msra.mxu0 %v1643
      %2202 = vmatmul.bf16.gmra.mxu0 %v2192
      %v2203 = vpop.f32.mrf.mxu0
      %v2204 = vadd.f32 0.0, %v2203
      %v2205 = vpop.f32.mrf.mxu0
      %2206 = vdwg.mxu0
      %v2207 = vpack.c.bf16 %v2204, %v2204
      %s2208 = scalar_lea.vmem %s7, 256
      %v2209 = vld [vmem:[%s2208] sm:$0xf]
      %v2210 = vld [vmem:[%s2208 + $0x4] sm:$0xf]
      %v2211 = vld [vmem:[%s2208 + $0x8] sm:$0xf]
      %v2212 = vld [vmem:[%s2208 + $0xc] sm:$0xf]
      %v2213 = vld [vmem:[%s2208 + $0x10] sm:$0xf]
      %v2214 = vld [vmem:[%s2208 + $0x14] sm:$0xf]
      %v2215 = vld [vmem:[%s2208 + $0x18] sm:$0xf]
      %v2216 = vld [vmem:[%s2208 + $0x1c] sm:$0xf]
      %v2225 = vunpack.c.l.b16 %v2209
      %v2226 = vunpack.c.l.b16 %v2210
      %v2227 = vunpack.c.l.b16 %v2211
      %v2228 = vunpack.c.l.b16 %v2212
      %v2229 = vunpack.c.l.b16 %v2213
      %v2230 = vunpack.c.l.b16 %v2214
      %v2231 = vunpack.c.l.b16 %v2215
      %v2232 = vunpack.c.l.b16 %v2216
      %v2233 = vpack.c.b16 %v2226, %v2225
      %v2234 = vpack.c.b16 %v2228, %v2227
      %v2235 = vpack.c.b16 %v2230, %v2229
      %v2236 = vpack.c.b16 %v2232, %v2231
      %v2242 = vsel %vm643, %v2207, 0
      %2244 = vmatpush.bf16.msra.mxu0 0
      %2245 = vmatpush.bf16.msra.mxu0 0
      %2246 = vmatpush.bf16.msra.mxu0 0
      %2247 = vmatpush.bf16.msra.mxu0 0
      %2248 = vmatpush.bf16.msra.mxu0 %v2236
      %2249 = vmatpush.bf16.msra.mxu0 %v2235
      %2250 = vmatpush.bf16.msra.mxu0 %v2234
      %2251 = vmatpush.bf16.msra.mxu0 %v2233
      %2252 = vmatmul.bf16.gmra.mxu0 %v2242
      %v2253 = vpop.f32.mrf.mxu0
      %v2254 = vadd.f32 0.0, %v2253
      %v2255 = vpop.f32.mrf.mxu0
      %2256 = vdwg.mxu0
      %v2257 = vadd.f32 %v2188, %v2254
      %v2258 = vld [vmem:[%s8] sm:$0x1]
      %v2259 = vadd.f32 %v2257, %v2258
      %v2260 = vmax.f32 %v2259, 0.0
      %v2261 = vpack.c.bf16 %v2260, %v2260
      %v2262 = vld [vmem:[%s9] sm:$0xff]
      %v2263 = vld [vmem:[%s9 + $0x8] sm:$0xff]
      %v2264 = vld [vmem:[%s9 + $0x10] sm:$0xff]
      %v2265 = vld [vmem:[%s9 + $0x18] sm:$0xff]
      %v2266 = vld [vmem:[%s9 + $0x20] sm:$0xff]
      %v2267 = vld [vmem:[%s9 + $0x28] sm:$0xff]
      %v2268 = vld [vmem:[%s9 + $0x30] sm:$0xff]
      %v2269 = vld [vmem:[%s9 + $0x38] sm:$0xff]
      %v2270 = vld [vmem:[%s9 + $0x40] sm:$0xff]
      %v2271 = vld [vmem:[%s9 + $0x48] sm:$0xff]
      %v2272 = vld [vmem:[%s9 + $0x50] sm:$0xff]
      %v2273 = vld [vmem:[%s9 + $0x58] sm:$0xff]
      %v2274 = vld [vmem:[%s9 + $0x60] sm:$0xff]
      %v2275 = vld [vmem:[%s9 + $0x68] sm:$0xff]
      %v2276 = vld [vmem:[%s9 + $0x70] sm:$0xff]
      %v2277 = vld [vmem:[%s9 + $0x78] sm:$0xff]
      %v2278 = vld [vmem:[%s10] sm:$0xf]
      %v2295 = vunpack.c.l.b16 %v2262
      %v2296 = vunpack.c.h.b16 %v2262
      %v2297 = vunpack.c.l.b16 %v2263
      %v2298 = vunpack.c.h.b16 %v2263
      %v2299 = vunpack.c.l.b16 %v2264
      %v2300 = vunpack.c.h.b16 %v2264
      %v2301 = vunpack.c.l.b16 %v2265
      %v2302 = vunpack.c.h.b16 %v2265
      %v2303 = vunpack.c.l.b16 %v2266
      %v2304 = vunpack.c.h.b16 %v2266
      %v2305 = vunpack.c.l.b16 %v2267
      %v2306 = vunpack.c.h.b16 %v2267
      %v2307 = vunpack.c.l.b16 %v2268
      %v2308 = vunpack.c.h.b16 %v2268
      %v2309 = vunpack.c.l.b16 %v2269
      %v2310 = vunpack.c.h.b16 %v2269
      %v2311 = vunpack.c.l.b16 %v2270
      %v2312 = vunpack.c.h.b16 %v2270
      %v2313 = vunpack.c.l.b16 %v2271
      %v2314 = vunpack.c.h.b16 %v2271
      %v2315 = vunpack.c.l.b16 %v2272
      %v2316 = vunpack.c.h.b16 %v2272
      %v2317 = vunpack.c.l.b16 %v2273
      %v2318 = vunpack.c.h.b16 %v2273
      %v2319 = vunpack.c.l.b16 %v2274
      %v2320 = vunpack.c.h.b16 %v2274
      %v2321 = vunpack.c.l.b16 %v2275
      %v2322 = vunpack.c.h.b16 %v2275
      %v2323 = vunpack.c.l.b16 %v2276
      %v2324 = vunpack.c.h.b16 %v2276
      %v2325 = vunpack.c.l.b16 %v2277
      %v2326 = vunpack.c.h.b16 %v2277
      %v2327 = vpack.c.b16 %v2299, %v2295
      %v2328 = vpack.c.b16 %v2300, %v2296
      %v2329 = vpack.c.b16 %v2301, %v2297
      %v2330 = vpack.c.b16 %v2302, %v2298
      %v2331 = vpack.c.b16 %v2307, %v2303
      %v2332 = vpack.c.b16 %v2308, %v2304
      %v2333 = vpack.c.b16 %v2309, %v2305
      %v2334 = vpack.c.b16 %v2310, %v2306
      %v2335 = vpack.c.b16 %v2315, %v2311
      %v2336 = vpack.c.b16 %v2316, %v2312
      %v2337 = vpack.c.b16 %v2317, %v2313
      %v2338 = vpack.c.b16 %v2318, %v2314
      %v2339 = vpack.c.b16 %v2323, %v2319
      %v2340 = vpack.c.b16 %v2324, %v2320
      %v2341 = vpack.c.b16 %v2325, %v2321
      %v2342 = vpack.c.b16 %v2326, %v2322
      %v2360 = vperm.slane %v2278, 0
      %v2361 = vperm.slane %v2278, 1
      %v2362 = vperm.slane %v2278, 2
      %v2363 = vperm.slane %v2278, 3
      %v2369 = vsel %vm643, %v2261, 0
      %2371 = vmatpush.bf16.msra.mxu0 0
      %2372 = vmatpush.bf16.msra.mxu0 0
      %2373 = vmatpush.bf16.msra.mxu0 0
      %2374 = vmatpush.bf16.msra.mxu0 0
      %2375 = vmatpush.bf16.msra.mxu0 %v2339
      %2376 = vmatpush.bf16.msra.mxu0 %v2335
      %2377 = vmatpush.bf16.msra.mxu0 %v2331
      %2378 = vmatpush.bf16.msra.mxu0 %v2327
      %2379 = vmatmul.bf16.gmra.mxu0 %v2369
      %v2380 = vpop.f32.mrf.mxu0
      %v2381 = vadd.f32 %v2360, %v2380
      %v2382 = vpop.f32.mrf.mxu0
      %2383 = vdwg.mxu0
      %2384 = vmatpush.bf16.msra.mxu0 0
      %2385 = vmatpush.bf16.msra.mxu0 0
      %2386 = vmatpush.bf16.msra.mxu0 0
      %2387 = vmatpush.bf16.msra.mxu0 0
      %2388 = vmatpush.bf16.msra.mxu0 %v2340
      %2389 = vmatpush.bf16.msra.mxu0 %v2336
      %2390 = vmatpush.bf16.msra.mxu0 %v2332
      %2391 = vmatpush.bf16.msra.mxu0 %v2328
      %2392 = vmatmul.bf16.gmra.mxu0 %v2369
      %v2393 = vpop.f32.mrf.mxu0
      %v2394 = vadd.f32 %v2361, %v2393
      %v2395 = vpop.f32.mrf.mxu0
      %2396 = vdwg.mxu0
      %2397 = vmatpush.bf16.msra.mxu0 0
      %2398 = vmatpush.bf16.msra.mxu0 0
      %2399 = vmatpush.bf16.msra.mxu0 0
      %2400 = vmatpush.bf16.msra.mxu0 0
      %2401 = vmatpush.bf16.msra.mxu0 %v2341
      %2402 = vmatpush.bf16.msra.mxu0 %v2337
      %2403 = vmatpush.bf16.msra.mxu0 %v2333
      %2404 = vmatpush.bf16.msra.mxu0 %v2329
      %2405 = vmatmul.bf16.gmra.mxu0 %v2369
      %v2406 = vpop.f32.mrf.mxu0
      %v2407 = vadd.f32 %v2362, %v2406
      %v2408 = vpop.f32.mrf.mxu0
      %2409 = vdwg.mxu0
      %2410 = vmatpush.bf16.msra.mxu0 0
      %2411 = vmatpush.bf16.msra.mxu0 0
      %2412 = vmatpush.bf16.msra.mxu0 0
      %2413 = vmatpush.bf16.msra.mxu0 0
      %2414 = vmatpush.bf16.msra.mxu0 %v2342
      %2415 = vmatpush.bf16.msra.mxu0 %v2338
      %2416 = vmatpush.bf16.msra.mxu0 %v2334
      %2417 = vmatpush.bf16.msra.mxu0 %v2330
      %2418 = vmatmul.bf16.gmra.mxu0 %v2369
      %v2419 = vpop.f32.mrf.mxu0
      %v2420 = vadd.f32 %v2363, %v2419
      %v2421 = vpop.f32.mrf.mxu0
      %2422 = vdwg.mxu0
      %v2423 = vmax.f32 %v2381, 0.0
      %v2424 = vmax.f32 %v2394, 0.0
      %v2425 = vmax.f32 %v2407, 0.0
      %v2426 = vmax.f32 %v2420, 0.0
      %v2431 = vrot.slane %v2424, 7
      %v2432 = vrot.slane %v2425, 6
      %v2433 = vrot.slane %v2426, 5
      %vm2434 = vcmask 1040384
      %v2435 = vsel %vm2434, %v2423, %v2431
      %vm2436 = vcmask 1042434
      %v2437 = vsel %vm2436, %v2432, %v2433
      %vm2438 = vcmask 1041408
      %v2439 = vsel %vm2438, %v2435, %v2437
      %v2441 = vlaneseq
      %vm2442 = vcmp.ge.s32.totalorder %v2441, 0
      %vm2443 = vcmp.lt.s32.totalorder %v2441, 512
      %vm2444 = vmand %vm2442, %vm2443
      %2445 = vst.msk [vmem:[%s384] sm:$0xf] %vm2444, %v2439
      %p2446 = scmp.lt.s32.totalorder %s22, 1
      %s2447 = scalar_select %p2446, %s22, 1
      %s2448 = smul.addr %s2447, 4
      %s2449 = scalar_lea.vmem %s11, %s2448
      // Predicated region
      $region65: #{nature_cnn_forward.1} parent=63 // pred_check
        %p2450 = pneg %p276
      $region66: #{nature_cnn_forward.1} parent=63 // pred_check_branch
        %2452 = sbr.rel (%p2450) target = $region68
      $region67: #{nature_cnn_forward.1} parent=63 // pred_region
        _
      $region68: #{nature_cnn_forward.1} parent=63 // pred_fallthru
        _
    $region64: #{nature_cnn_forward.1} parent=5 // pred_fallthru
      _
    %p2453 = scmp.le.s32.totalorder 2, %s17
    // Predicated region
    $region69: #{nature_cnn_forward.1} parent=5 // pred_check
      %p2454 = pneg %p2453
    $region70: #{nature_cnn_forward.1} parent=5 // pred_check_branch
      %2456 = sbr.rel (%p2454) target = $region72
    $region71: #{nature_cnn_forward.1} parent=5 // pred_region
      %s2457 = ssub.s32 %s17, 2
      // Predicated region
      $region73: #{nature_cnn_forward.1} parent=71 // pred_check
        %p2458 = pneg %p282
      $region74: #{nature_cnn_forward.1} parent=71 // pred_check_branch
        %2460 = sbr.rel (%p2458) target = $region76
      $region75: #{nature_cnn_forward.1} parent=71 // pred_region
        %p2461 = scmp.lt.s32.totalorder %s23, 1
        %s2462 = scalar_select %p2461, %s23, 1
        %s2463 = smul.addr %s2462, 4
        %s2464 = scalar_lea.vmem %s11, %s2463
      $region76: #{nature_cnn_forward.1} parent=71 // pred_fallthru
        _
    $region72: #{nature_cnn_forward.1} parent=5 // pred_fallthru
      _
  $region6: #{nature_cnn_forward.1} parent=0 // loop_footer
    %s21 = sadd.s32 1, %s17
  $region7: #{nature_cnn_forward.1} parent=0 // loop_footer_branch
    %16 = sbr.rel target = $region3
  $region8: #{nature_cnn_forward.1} parent=0 // loop_exit
    _

</llo_original>
